<compile_context>
chip_gen: v6e
topology: v6e:2x2x1
jax: 0.10.0
libtpu: 0.0.40
codegen_flags: <defaults>
</compile_context>

<pallas_src>
import jax
import jax.numpy as jnp
from jax.experimental import pallas as pl
from jax.experimental.pallas import tpu as pltpu

EPS = 1e-6

LANES = 512          # lane-dense last dim (multiple of 128)
MAX_TILE_ROWS = 512  # 512x512 f32 = 1 MiB per input tile per pipeline buffer
MIN_TILE_ROWS = 32   # sublane-safe for f32 / bf16 / int8 inputs
NSLOTS = 2           # shard the streaming reduction across (up to) 2 TCs


def _round_up(x, m):
    return ((x + m - 1) // m) * m


def _dice_sums_kernel(prob_ref, binary_ref, gt_ref, mask_ref,
                      s_pg_ref, s_p_ref, s_bg_ref, s_b_ref, s_g_ref,
                      acc_pg, acc_p, acc_bg, acc_b, acc_g):
    j = pl.program_id(1)

    @pl.when(j == 0)
    def _init():
        acc_pg[...] = jnp.zeros_like(acc_pg)
        acc_p[...] = jnp.zeros_like(acc_p)
        acc_bg[...] = jnp.zeros_like(acc_bg)
        acc_b[...] = jnp.zeros_like(acc_b)
        acc_g[...] = jnp.zeros_like(acc_g)

    prob = prob_ref[...].astype(jnp.float32)
    binary = binary_ref[...].astype(jnp.float32)
    gt = gt_ref[...].astype(jnp.float32)
    mask = mask_ref[...].astype(jnp.float32)

    pm = prob * mask
    bm = binary * mask
    gm = gt * mask

    # Pure-VPU elementwise accumulation; the full (XLU) reduction is deferred
    # to the finalize branch so the streaming loop stays DMA-bound.
    acc_pg[...] += pm * gt
    acc_p[...] += pm
    acc_bg[...] += bm * gt
    acc_b[...] += bm
    acc_g[...] += gm

    @pl.when(j == pl.num_programs(1) - 1)
    def _finalize():
        s_pg_ref[...] = jnp.sum(acc_pg[...], keepdims=True).reshape(1, 1, 1)
        s_p_ref[...] = jnp.sum(acc_p[...], keepdims=True).reshape(1, 1, 1)
        s_bg_ref[...] = jnp.sum(acc_bg[...], keepdims=True).reshape(1, 1, 1)
        s_b_ref[...] = jnp.sum(acc_b[...], keepdims=True).reshape(1, 1, 1)
        s_g_ref[...] = jnp.sum(acc_g[...], keepdims=True).reshape(1, 1, 1)


def _dice_sums(prob, binary, gt, mask):
    """Flatten inputs to a lane-dense (rows, LANES) slab and return the five
    masked global sums needed by both dice losses."""
    total = prob.size
    rows = -(-total // LANES)
    rows_per_slot = -(-rows // NSLOTS)
    tile_r = min(MAX_TILE_ROWS, _round_up(max(rows_per_slot, 1), MIN_TILE_ROWS))
    rows_per_slot = _round_up(rows_per_slot, tile_r)
    padded_rows = rows_per_slot * NSLOTS
    tiles_per_slot = rows_per_slot // tile_r
    pad = padded_rows * LANES - total

    def prep(x):
        x = x.reshape(-1)
        if pad:
            # Zero padding is harmless: every accumulated term carries a
            # mask (or gt*mask) factor that is zero on the padded tail.
            x = jnp.pad(x, (0, pad))
        return x.reshape(padded_rows, LANES)

    in_spec = pl.BlockSpec((tile_r, LANES),
                           lambda i, j: (i * tiles_per_slot + j, 0))
    out_spec = pl.BlockSpec((1, 1, 1), lambda i, j: (i, 0, 0))
    out_shape = jax.ShapeDtypeStruct((NSLOTS, 1, 1), jnp.float32)

    parts = pl.pallas_call(
        _dice_sums_kernel,
        out_shape=(out_shape,) * 5,
        grid_spec=pltpu.PrefetchScalarGridSpec(
            num_scalar_prefetch=0,
            grid=(NSLOTS, tiles_per_slot),
            in_specs=[in_spec] * 4,
            out_specs=[out_spec] * 5,
            scratch_shapes=[pltpu.VMEM((tile_r, LANES), jnp.float32)] * 5,
        ),
        compiler_params=pltpu.CompilerParams(
            dimension_semantics=("parallel", "arbitrary"),
            vmem_limit_bytes=32 * 1024 * 1024,
        ),
    )(prep(prob), prep(binary), prep(gt), prep(mask))

    # Combine the per-core partial sums (trivial scalar work in XLA).
    return tuple(jnp.sum(p) for p in parts)


def adaptive_dice_loss(pred, target, eps=EPS):
    """pred: dict with 'prob' (N,1,H,W) and 'binary' (N,1,H,W)
       target: dict with 'gt' (N,1,H,W) and 'mask' (N,H,W)."""
    prob = pred['prob']
    binary = pred['binary']
    gt = target['gt']
    mask = target['mask']

    # DiceLoss squeezes the size-1 channel dim when pred.dim() == 4.
    if prob.ndim == 4:
        prob = prob[:, 0]
    if binary.ndim == 4:
        binary = binary[:, 0]
    if gt.ndim == 4:
        gt = gt[:, 0]

    s_pg, s_p, s_bg, s_b, s_g = _dice_sums(prob, binary, gt, mask)

    union_p = s_p + s_g + eps
    union_b = s_b + s_g + eps
    main_loss = 1.0 - 2.0 * s_pg / union_p
    binary_loss = 1.0 - 2.0 * s_bg / union_b
    loss = main_loss + binary_loss
    return loss, dict(main_loss=main_loss, binary_loss=binary_loss)


def _reference(pred, target):
    prob = pred['prob'][:, 0]
    binary = pred['binary'][:, 0]
    gt = target['gt'][:, 0]
    mask = target['mask']

    def dice(p):
        inter = jnp.sum(p * gt * mask)
        union = jnp.sum(p * mask) + jnp.sum(gt * mask) + EPS
        return 1.0 - 2.0 * inter / union

    m, b = dice(prob), dice(binary)
    return m + b, m, b


if __name__ == "__main__":
    key = jax.random.PRNGKey(0)
    k1, k2, k3, k4 = jax.random.split(key, 4)

    N, C, H, W = 2, 1, 16, 16
    prob = jax.nn.sigmoid(jax.random.normal(k1, (N, C, H, W), jnp.float32))
    binary = jax.nn.sigmoid(4.0 * jax.random.normal(k2, (N, C, H, W), jnp.float32))
    gt = (jax.random.uniform(k3, (N, C, H, W)) > 0.5).astype(jnp.float32)
    mask = (jax.random.uniform(k4, (N, H, W)) > 0.2).astype(jnp.float32)

    pred = dict(prob=prob, binary=binary)
    target = dict(gt=gt, mask=mask)

    loss, metrics = adaptive_dice_loss(pred, target)
    loss = jax.block_until_ready(loss)

    ref_loss, ref_main, ref_bin = _reference(pred, target)
    assert jnp.allclose(loss, ref_loss, atol=1e-5), (loss, ref_loss)
    assert jnp.allclose(metrics['main_loss'], ref_main, atol=1e-5)
    assert jnp.allclose(metrics['binary_loss'], ref_bin, atol=1e-5)

    print("KERNEL_OK")
</pallas_src>

<mosaic_0001>
module attributes {stable_mosaic.version = 11 : i64} {
  func.func @_dice_sums_kernel(%arg0: i32, %arg1: i32, %arg2: memref<32x512xf32, #tpu.memory_space<vmem>>, %arg3: memref<32x512xf32, #tpu.memory_space<vmem>>, %arg4: memref<32x512xf32, #tpu.memory_space<vmem>>, %arg5: memref<32x512xf32, #tpu.memory_space<vmem>>, %arg6: memref<1x1x1xf32, #tpu.memory_space<vmem>>, %arg7: memref<1x1x1xf32, #tpu.memory_space<vmem>>, %arg8: memref<1x1x1xf32, #tpu.memory_space<vmem>>, %arg9: memref<1x1x1xf32, #tpu.memory_space<vmem>>, %arg10: memref<1x1x1xf32, #tpu.memory_space<vmem>>, %arg11: memref<32x512xf32, #tpu.memory_space<vmem>>, %arg12: memref<32x512xf32, #tpu.memory_space<vmem>>, %arg13: memref<32x512xf32, #tpu.memory_space<vmem>>, %arg14: memref<32x512xf32, #tpu.memory_space<vmem>>, %arg15: memref<32x512xf32, #tpu.memory_space<vmem>>) attributes {dimension_semantics = [#tpu.dimension_semantics<parallel>, #tpu.dimension_semantics<arbitrary>], iteration_bounds = array<i64: 2, 1>, scalar_prefetch = 0 : i64, scratch_operands = 5 : i64, tpu.core_type = #tpu.core_type<tc>, window_params = [{transform_indices = @transform_0, window_bounds = array<i64: 32, 512>}, {transform_indices = @transform_1, window_bounds = array<i64: 32, 512>}, {transform_indices = @transform_2, window_bounds = array<i64: 32, 512>}, {transform_indices = @transform_3, window_bounds = array<i64: 32, 512>}, {transform_indices = @transform_4, window_bounds = array<i64: 1, 1, 1>}, {transform_indices = @transform_5, window_bounds = array<i64: 1, 1, 1>}, {transform_indices = @transform_6, window_bounds = array<i64: 1, 1, 1>}, {transform_indices = @transform_7, window_bounds = array<i64: 1, 1, 1>}, {transform_indices = @transform_8, window_bounds = array<i64: 1, 1, 1>}]} {
    %c0_i32 = arith.constant 0 : i32
    %0 = arith.cmpi eq, %arg1, %c0_i32 : i32
    %1 = arith.extui %0 : i1 to i32
    %c0_i32_0 = arith.constant 0 : i32
    %2 = arith.cmpi ne, %1, %c0_i32_0 : i32
    scf.if %2 {
      %cst = arith.constant 0.000000e+00 : f32
      %30 = vector.broadcast %cst : f32 to vector<32x512xf32>
      %c0_30 = arith.constant 0 : index
      %c0_31 = arith.constant 0 : index
      %31 = vector.load %arg11[%c0_30, %c0_31] : memref<32x512xf32, #tpu.memory_space<vmem>>, vector<32x512xf32>
      tpu.vector_store %arg11[%c0_30, %c0_31], %30 {strides = array<i32>} : memref<32x512xf32, #tpu.memory_space<vmem>>, vector<32x512xf32>,
      %cst_32 = arith.constant 0.000000e+00 : f32
      %32 = vector.broadcast %cst_32 : f32 to vector<32x512xf32>
      %c0_33 = arith.constant 0 : index
      %c0_34 = arith.constant 0 : index
      %33 = vector.load %arg12[%c0_33, %c0_34] : memref<32x512xf32, #tpu.memory_space<vmem>>, vector<32x512xf32>
      tpu.vector_store %arg12[%c0_33, %c0_34], %32 {strides = array<i32>} : memref<32x512xf32, #tpu.memory_space<vmem>>, vector<32x512xf32>,
      %cst_35 = arith.constant 0.000000e+00 : f32
      %34 = vector.broadcast %cst_35 : f32 to vector<32x512xf32>
      %c0_36 = arith.constant 0 : index
      %c0_37 = arith.constant 0 : index
      %35 = vector.load %arg13[%c0_36, %c0_37] : memref<32x512xf32, #tpu.memory_space<vmem>>, vector<32x512xf32>
      tpu.vector_store %arg13[%c0_36, %c0_37], %34 {strides = array<i32>} : memref<32x512xf32, #tpu.memory_space<vmem>>, vector<32x512xf32>,
      %cst_38 = arith.constant 0.000000e+00 : f32
      %36 = vector.broadcast %cst_38 : f32 to vector<32x512xf32>
      %c0_39 = arith.constant 0 : index
      %c0_40 = arith.constant 0 : index
      %37 = vector.load %arg14[%c0_39, %c0_40] : memref<32x512xf32, #tpu.memory_space<vmem>>, vector<32x512xf32>
      tpu.vector_store %arg14[%c0_39, %c0_40], %36 {strides = array<i32>} : memref<32x512xf32, #tpu.memory_space<vmem>>, vector<32x512xf32>,
      %cst_41 = arith.constant 0.000000e+00 : f32
      %38 = vector.broadcast %cst_41 : f32 to vector<32x512xf32>
      %c0_42 = arith.constant 0 : index
      %c0_43 = arith.constant 0 : index
      %39 = vector.load %arg15[%c0_42, %c0_43] : memref<32x512xf32, #tpu.memory_space<vmem>>, vector<32x512xf32>
      tpu.vector_store %arg15[%c0_42, %c0_43], %38 {strides = array<i32>} : memref<32x512xf32, #tpu.memory_space<vmem>>, vector<32x512xf32>,
    } else {
    }
    %c0 = arith.constant 0 : index
    %c0_1 = arith.constant 0 : index
    %3 = vector.load %arg2[%c0, %c0_1] : memref<32x512xf32, #tpu.memory_space<vmem>>, vector<32x512xf32>
    %c0_2 = arith.constant 0 : index
    %c0_3 = arith.constant 0 : index
    %4 = vector.load %arg3[%c0_2, %c0_3] : memref<32x512xf32, #tpu.memory_space<vmem>>, vector<32x512xf32>
    %c0_4 = arith.constant 0 : index
    %c0_5 = arith.constant 0 : index
    %5 = vector.load %arg4[%c0_4, %c0_5] : memref<32x512xf32, #tpu.memory_space<vmem>>, vector<32x512xf32>
    %c0_6 = arith.constant 0 : index
    %c0_7 = arith.constant 0 : index
    %6 = vector.load %arg5[%c0_6, %c0_7] : memref<32x512xf32, #tpu.memory_space<vmem>>, vector<32x512xf32>
    %7 = arith.mulf %3, %6 : vector<32x512xf32>
    %8 = arith.mulf %4, %6 : vector<32x512xf32>
    %9 = arith.mulf %5, %6 : vector<32x512xf32>
    %c0_8 = arith.constant 0 : index
    %c0_9 = arith.constant 0 : index
    %10 = vector.load %arg11[%c0_8, %c0_9] : memref<32x512xf32, #tpu.memory_space<vmem>>, vector<32x512xf32>
    %11 = arith.mulf %7, %5 : vector<32x512xf32>
    %12 = arith.addf %10, %11 : vector<32x512xf32>
    %c0_10 = arith.constant 0 : index
    %c0_11 = arith.constant 0 : index
    %13 = vector.load %arg11[%c0_10, %c0_11] : memref<32x512xf32, #tpu.memory_space<vmem>>, vector<32x512xf32>
    tpu.vector_store %arg11[%c0_10, %c0_11], %12 {strides = array<i32>} : memref<32x512xf32, #tpu.memory_space<vmem>>, vector<32x512xf32>,
    %c0_12 = arith.constant 0 : index
    %c0_13 = arith.constant 0 : index
    %14 = vector.load %arg12[%c0_12, %c0_13] : memref<32x512xf32, #tpu.memory_space<vmem>>, vector<32x512xf32>
    %15 = arith.addf %14, %7 : vector<32x512xf32>
    %c0_14 = arith.constant 0 : index
    %c0_15 = arith.constant 0 : index
    %16 = vector.load %arg12[%c0_14, %c0_15] : memref<32x512xf32, #tpu.memory_space<vmem>>, vector<32x512xf32>
    tpu.vector_store %arg12[%c0_14, %c0_15], %15 {strides = array<i32>} : memref<32x512xf32, #tpu.memory_space<vmem>>, vector<32x512xf32>,
    %c0_16 = arith.constant 0 : index
    %c0_17 = arith.constant 0 : index
    %17 = vector.load %arg13[%c0_16, %c0_17] : memref<32x512xf32, #tpu.memory_space<vmem>>, vector<32x512xf32>
    %18 = arith.mulf %8, %5 : vector<32x512xf32>
    %19 = arith.addf %17, %18 : vector<32x512xf32>
    %c0_18 = arith.constant 0 : index
    %c0_19 = arith.constant 0 : index
    %20 = vector.load %arg13[%c0_18, %c0_19] : memref<32x512xf32, #tpu.memory_space<vmem>>, vector<32x512xf32>
    tpu.vector_store %arg13[%c0_18, %c0_19], %19 {strides = array<i32>} : memref<32x512xf32, #tpu.memory_space<vmem>>, vector<32x512xf32>,
    %c0_20 = arith.constant 0 : index
    %c0_21 = arith.constant 0 : index
    %21 = vector.load %arg14[%c0_20, %c0_21] : memref<32x512xf32, #tpu.memory_space<vmem>>, vector<32x512xf32>
    %22 = arith.addf %21, %8 : vector<32x512xf32>
    %c0_22 = arith.constant 0 : index
    %c0_23 = arith.constant 0 : index
    %23 = vector.load %arg14[%c0_22, %c0_23] : memref<32x512xf32, #tpu.memory_space<vmem>>, vector<32x512xf32>
    tpu.vector_store %arg14[%c0_22, %c0_23], %22 {strides = array<i32>} : memref<32x512xf32, #tpu.memory_space<vmem>>, vector<32x512xf32>,
    %c0_24 = arith.constant 0 : index
    %c0_25 = arith.constant 0 : index
    %24 = vector.load %arg15[%c0_24, %c0_25] : memref<32x512xf32, #tpu.memory_space<vmem>>, vector<32x512xf32>
    %25 = arith.addf %24, %9 : vector<32x512xf32>
    %c0_26 = arith.constant 0 : index
    %c0_27 = arith.constant 0 : index
    %26 = vector.load %arg15[%c0_26, %c0_27] : memref<32x512xf32, #tpu.memory_space<vmem>>, vector<32x512xf32>
    tpu.vector_store %arg15[%c0_26, %c0_27], %25 {strides = array<i32>} : memref<32x512xf32, #tpu.memory_space<vmem>>, vector<32x512xf32>,
    %c0_i32_28 = arith.constant 0 : i32
    %27 = arith.cmpi eq, %arg1, %c0_i32_28 : i32
    %28 = arith.extui %27 : i1 to i32
    %c0_i32_29 = arith.constant 0 : i32
    %29 = arith.cmpi ne, %28, %c0_i32_29 : i32
    scf.if %29 {
      %c0_30 = arith.constant 0 : index
      %c0_31 = arith.constant 0 : index
      %30 = vector.load %arg11[%c0_30, %c0_31] : memref<32x512xf32, #tpu.memory_space<vmem>>, vector<32x512xf32>
      %31 = vector.shape_cast %30 : vector<32x512xf32> to vector<1x32x512xf32>
      %cst = arith.constant dense<0.000000e+00> : vector<1xf32>
      %32 = vector.multi_reduction <add>, %31, %cst [1, 2] : vector<1x32x512xf32> to vector<1xf32>
      %33 = vector.shape_cast %32 : vector<1xf32> to vector<1x1x1xf32>
      %34 = vector.extract %33[0, 0, 0] : f32 from vector<1x1x1xf32>
      %35 = vector.broadcast %34 : f32 to vector<1x1xf32>
      %36 = vector.shape_cast %35 : vector<1x1xf32> to vector<1x1x1xf32>
      %c0_32 = arith.constant 0 : index
      %c0_33 = arith.constant 0 : index
      %c0_34 = arith.constant 0 : index
      %37 = vector.load %arg6[%c0_32, %c0_33, %c0_34] : memref<1x1x1xf32, #tpu.memory_space<vmem>>, vector<1x1x1xf32>
      tpu.vector_store %arg6[%c0_32, %c0_33, %c0_34], %36 {strides = array<i32>} : memref<1x1x1xf32, #tpu.memory_space<vmem>>, vector<1x1x1xf32>,
      %c0_35 = arith.constant 0 : index
      %c0_36 = arith.constant 0 : index
      %38 = vector.load %arg12[%c0_35, %c0_36] : memref<32x512xf32, #tpu.memory_space<vmem>>, vector<32x512xf32>
      %39 = vector.shape_cast %38 : vector<32x512xf32> to vector<1x32x512xf32>
      %cst_37 = arith.constant dense<0.000000e+00> : vector<1xf32>
      %40 = vector.multi_reduction <add>, %39, %cst_37 [1, 2] : vector<1x32x512xf32> to vector<1xf32>
      %41 = vector.shape_cast %40 : vector<1xf32> to vector<1x1x1xf32>
      %42 = vector.extract %41[0, 0, 0] : f32 from vector<1x1x1xf32>
      %43 = vector.broadcast %42 : f32 to vector<1x1xf32>
      %44 = vector.shape_cast %43 : vector<1x1xf32> to vector<1x1x1xf32>
      %c0_38 = arith.constant 0 : index
      %c0_39 = arith.constant 0 : index
      %c0_40 = arith.constant 0 : index
      %45 = vector.load %arg7[%c0_38, %c0_39, %c0_40] : memref<1x1x1xf32, #tpu.memory_space<vmem>>, vector<1x1x1xf32>
      tpu.vector_store %arg7[%c0_38, %c0_39, %c0_40], %44 {strides = array<i32>} : memref<1x1x1xf32, #tpu.memory_space<vmem>>, vector<1x1x1xf32>,
      %c0_41 = arith.constant 0 : index
      %c0_42 = arith.constant 0 : index
      %46 = vector.load %arg13[%c0_41, %c0_42] : memref<32x512xf32, #tpu.memory_space<vmem>>, vector<32x512xf32>
      %47 = vector.shape_cast %46 : vector<32x512xf32> to vector<1x32x512xf32>
      %cst_43 = arith.constant dense<0.000000e+00> : vector<1xf32>
      %48 = vector.multi_reduction <add>, %47, %cst_43 [1, 2] : vector<1x32x512xf32> to vector<1xf32>
      %49 = vector.shape_cast %48 : vector<1xf32> to vector<1x1x1xf32>
      %50 = vector.extract %49[0, 0, 0] : f32 from vector<1x1x1xf32>
      %51 = vector.broadcast %50 : f32 to vector<1x1xf32>
      %52 = vector.shape_cast %51 : vector<1x1xf32> to vector<1x1x1xf32>
      %c0_44 = arith.constant 0 : index
      %c0_45 = arith.constant 0 : index
      %c0_46 = arith.constant 0 : index
      %53 = vector.load %arg8[%c0_44, %c0_45, %c0_46] : memref<1x1x1xf32, #tpu.memory_space<vmem>>, vector<1x1x1xf32>
      tpu.vector_store %arg8[%c0_44, %c0_45, %c0_46], %52 {strides = array<i32>} : memref<1x1x1xf32, #tpu.memory_space<vmem>>, vector<1x1x1xf32>,
      %c0_47 = arith.constant 0 : index
      %c0_48 = arith.constant 0 : index
      %54 = vector.load %arg14[%c0_47, %c0_48] : memref<32x512xf32, #tpu.memory_space<vmem>>, vector<32x512xf32>
      %55 = vector.shape_cast %54 : vector<32x512xf32> to vector<1x32x512xf32>
      %cst_49 = arith.constant dense<0.000000e+00> : vector<1xf32>
      %56 = vector.multi_reduction <add>, %55, %cst_49 [1, 2] : vector<1x32x512xf32> to vector<1xf32>
      %57 = vector.shape_cast %56 : vector<1xf32> to vector<1x1x1xf32>
      %58 = vector.extract %57[0, 0, 0] : f32 from vector<1x1x1xf32>
      %59 = vector.broadcast %58 : f32 to vector<1x1xf32>
      %60 = vector.shape_cast %59 : vector<1x1xf32> to vector<1x1x1xf32>
      %c0_50 = arith.constant 0 : index
      %c0_51 = arith.constant 0 : index
      %c0_52 = arith.constant 0 : index
      %61 = vector.load %arg9[%c0_50, %c0_51, %c0_52] : memref<1x1x1xf32, #tpu.memory_space<vmem>>, vector<1x1x1xf32>
      tpu.vector_store %arg9[%c0_50, %c0_51, %c0_52], %60 {strides = array<i32>} : memref<1x1x1xf32, #tpu.memory_space<vmem>>, vector<1x1x1xf32>,
      %c0_53 = arith.constant 0 : index
      %c0_54 = arith.constant 0 : index
      %62 = vector.load %arg15[%c0_53, %c0_54] : memref<32x512xf32, #tpu.memory_space<vmem>>, vector<32x512xf32>
      %63 = vector.shape_cast %62 : vector<32x512xf32> to vector<1x32x512xf32>
      %cst_55 = arith.constant dense<0.000000e+00> : vector<1xf32>
      %64 = vector.multi_reduction <add>, %63, %cst_55 [1, 2] : vector<1x32x512xf32> to vector<1xf32>
      %65 = vector.shape_cast %64 : vector<1xf32> to vector<1x1x1xf32>
      %66 = vector.extract %65[0, 0, 0] : f32 from vector<1x1x1xf32>
      %67 = vector.broadcast %66 : f32 to vector<1x1xf32>
      %68 = vector.shape_cast %67 : vector<1x1xf32> to vector<1x1x1xf32>
      %c0_56 = arith.constant 0 : index
      %c0_57 = arith.constant 0 : index
      %c0_58 = arith.constant 0 : index
      %69 = vector.load %arg10[%c0_56, %c0_57, %c0_58] : memref<1x1x1xf32, #tpu.memory_space<vmem>>, vector<1x1x1xf32>
      tpu.vector_store %arg10[%c0_56, %c0_57, %c0_58], %68 {strides = array<i32>} : memref<1x1x1xf32, #tpu.memory_space<vmem>>, vector<1x1x1xf32>,
    } else {
    }
    return
  }
  func.func @transform_0(%arg0: i32, %arg1: i32) -> (i32, i32) {
    %c1_i32 = arith.constant 1 : i32
    %0 = arith.muli %arg0, %c1_i32 : i32
    %1 = arith.addi %0, %arg1 : i32
    %c0_i32 = arith.constant 0 : i32
    %c0_i32_0 = arith.constant 0 : i32
    return %1, %c0_i32 : i32, i32
  }
  func.func @transform_1(%arg0: i32, %arg1: i32) -> (i32, i32) {
    %c1_i32 = arith.constant 1 : i32
    %0 = arith.muli %arg0, %c1_i32 : i32
    %1 = arith.addi %0, %arg1 : i32
    %c0_i32 = arith.constant 0 : i32
    %c0_i32_0 = arith.constant 0 : i32
    return %1, %c0_i32 : i32, i32
  }
  func.func @transform_2(%arg0: i32, %arg1: i32) -> (i32, i32) {
    %c1_i32 = arith.constant 1 : i32
    %0 = arith.muli %arg0, %c1_i32 : i32
    %1 = arith.addi %0, %arg1 : i32
    %c0_i32 = arith.constant 0 : i32
    %c0_i32_0 = arith.constant 0 : i32
    return %1, %c0_i32 : i32, i32
  }
  func.func @transform_3(%arg0: i32, %arg1: i32) -> (i32, i32) {
    %c1_i32 = arith.constant 1 : i32
    %0 = arith.muli %arg0, %c1_i32 : i32
    %1 = arith.addi %0, %arg1 : i32
    %c0_i32 = arith.constant 0 : i32
    %c0_i32_0 = arith.constant 0 : i32
    return %1, %c0_i32 : i32, i32
  }
  func.func @transform_4(%arg0: i32, %arg1: i32) -> (i32, i32, i32) {
    %c0_i32 = arith.constant 0 : i32
    %c0_i32_0 = arith.constant 0 : i32
    %c0_i32_1 = arith.constant 0 : i32
    return %arg0, %c0_i32, %c0_i32_0 : i32, i32, i32
  }
  func.func @transform_5(%arg0: i32, %arg1: i32) -> (i32, i32, i32) {
    %c0_i32 = arith.constant 0 : i32
    %c0_i32_0 = arith.constant 0 : i32
    %c0_i32_1 = arith.constant 0 : i32
    return %arg0, %c0_i32, %c0_i32_0 : i32, i32, i32
  }
  func.func @transform_6(%arg0: i32, %arg1: i32) -> (i32, i32, i32) {
    %c0_i32 = arith.constant 0 : i32
    %c0_i32_0 = arith.constant 0 : i32
    %c0_i32_1 = arith.constant 0 : i32
    return %arg0, %c0_i32, %c0_i32_0 : i32, i32, i32
  }
  func.func @transform_7(%arg0: i32, %arg1: i32) -> (i32, i32, i32) {
    %c0_i32 = arith.constant 0 : i32
    %c0_i32_0 = arith.constant 0 : i32
    %c0_i32_1 = arith.constant 0 : i32
    return %arg0, %c0_i32, %c0_i32_0 : i32, i32, i32
  }
  func.func @transform_8(%arg0: i32, %arg1: i32) -> (i32, i32, i32) {
    %c0_i32 = arith.constant 0 : i32
    %c0_i32_0 = arith.constant 0 : i32
    %c0_i32_1 = arith.constant 0 : i32
    return %arg0, %c0_i32, %c0_i32_0 : i32, i32, i32
  }
}

</mosaic_0001>

<llo_original>
// kernel: tpu_custom_call.1
$region0: #{tpu_custom_call.1}
  #allocation0 [shape = 'u32[]', space=smem, size = 0x4, offset = 0x4, fixed_abs, tag = 'smem constant byte address 0x4 - core index']
  #allocation1 [shape = 'u32[144,128]{1,0:T(1,128)}', space=vmem, size = 0x12000, scoped, tag = 'internal scratch']
  #allocation2 [shape = 'f32[32,512]{1,0:T(8,128)}', space=vmem, size = 0x10000, scoped, tag = 'scratch operand']
  #allocation3 [shape = 'f32[32,512]{1,0:T(8,128)}', space=vmem, size = 0x10000, scoped, tag = 'scratch operand']
  #allocation4 [shape = 'f32[32,512]{1,0:T(8,128)}', space=vmem, size = 0x10000, scoped, tag = 'scratch operand']
  #allocation5 [shape = 'f32[32,512]{1,0:T(8,128)}', space=vmem, size = 0x10000, scoped, tag = 'scratch operand']
  #allocation6 [shape = 'f32[32,512]{1,0:T(8,128)}', space=vmem, size = 0x10000, scoped, tag = 'scratch operand']
  %s0 = inlined_call_operand.hbm [shape: f32[64,512], index: 0, kind: input, shape index: {}]
  %s1 = inlined_call_operand.hbm [shape: f32[64,512], index: 1, kind: input, shape index: {}]
  %s2 = inlined_call_operand.hbm [shape: f32[64,512], index: 2, kind: input, shape index: {}]
  %s3 = inlined_call_operand.hbm [shape: f32[64,512], index: 3, kind: input, shape index: {}]
  %s4 = inlined_call_operand.vmem [shape: f32[2,1,1], index: 4, kind: output, shape index: {0}]
  %s5 = inlined_call_operand.vmem [shape: f32[2,1,1], index: 5, kind: output, shape index: {1}]
  %s6 = inlined_call_operand.vmem [shape: f32[2,1,1], index: 6, kind: output, shape index: {2}]
  %s7 = inlined_call_operand.vmem [shape: f32[2,1,1], index: 7, kind: output, shape index: {3}]
  %s8 = inlined_call_operand.vmem [shape: f32[2,1,1], index: 8, kind: output, shape index: {4}]
  %9 = xla_tuple %s4, %s5, %s6, %s7, %s8
  %s10 = sld [smem:[#allocation0]]
  $region105: #{tpu_custom_call.1} parent=0
    _
  %s12 = ssub.s32 1, %s10
  %s13 = scalar_select 0, %s12, %s10
  $region1: #{tpu_custom_call.1} parent=0
    #allocation7 [shape = 'u8[131072]{0}', space=vmem, size = 0x20000, scoped, tag = 'input window, operand 0']
    #allocation8 [shape = 's32[2]{0}', space=sflag, size = 0x8, scoped, tag = 'scoped memory for tpu_custom_call.1']
    #allocation9 [shape = 'u8[131072]{0}', space=vmem, size = 0x20000, scoped, tag = 'input window, operand 1']
    #allocation10 [shape = 's32[2]{0}', space=sflag, size = 0x8, scoped, tag = 'scoped memory for tpu_custom_call.1']
    #allocation11 [shape = 'u8[131072]{0}', space=vmem, size = 0x20000, scoped, tag = 'input window, operand 2']
    #allocation12 [shape = 'u8[131072]{0}', space=vmem, size = 0x20000, scoped, tag = 'input window, operand 3']
    #allocation13 [shape = 's32[2]{0}', space=sflag, size = 0x8, scoped, tag = 'scoped memory for tpu_custom_call.1']
    %14 = vsyncpa [#allocation8], 0
    %s15 = scalar_lea.sflag [#allocation8], 1
    %16 = vsyncpa %s15, 0
    %17 = vsyncpa [#allocation10], 0
    %s18 = scalar_lea.sflag [#allocation10], 1
    %19 = vsyncpa %s18, 0
    %20 = vsyncpa [#allocation13], 0
    %s21 = scalar_lea.sflag [#allocation13], 1
    %22 = vsyncpa %s21, 0
    loop: start=0, step=1, limit=4
    $region2: #{tpu_custom_call.1} parent=1 // loop_pre_header
      _
    $region3: #{tpu_custom_call.1} parent=1 // loop_header
      %s24 = sphi 0, %s28
      %p25 = scmp.ge.s32.totalorder %s24, 4
      %s31 = sphi 0, %s43
      %s32 = sphi 0, %s39
      %s33 = sphi 0, %s31
      %s34 = sphi 0, %s32
      %s35 = sphi 0, %s33
      %s36 = sphi 0, %s34
      %s48 = sphi 0, %s50
      %s51 = sphi 0, %s48
      %s52 = sphi 0, %s51
      %s68 = sphi 0, %s52
      %s76 = sphi 0, %s78
      %s79 = sphi 0, %s76
      %s80 = sphi 0, %s79
      %s96 = sphi 0, %s80
      %s104 = sphi 0, %s106
      %s107 = sphi 0, %s104
      %s108 = sphi 0, %s107
      %s124 = sphi 0, %s108
      %s132 = sphi 0, %s134
      %s135 = sphi 0, %s132
      %s136 = sphi 0, %s135
      %s152 = sphi 0, %s136
      %s158 = sphi 0, %s160
      %s161 = sphi 0, %s158
      %s162 = sphi 0, %s161
      %s178 = sphi 0, %s162
      %s184 = sphi 0, %s186
      %s187 = sphi 0, %s184
      %s188 = sphi 0, %s187
      %s204 = sphi 0, %s188
      %s210 = sphi 0, %s212
      %s213 = sphi 0, %s210
      %s214 = sphi 0, %s213
      %s230 = sphi 0, %s214
      %s236 = sphi 0, %s238
      %s239 = sphi 0, %s236
      %s240 = sphi 0, %s239
      %s256 = sphi 0, %s240
      %s262 = sphi 0, %s264
      %s265 = sphi 0, %s262
      %s266 = sphi 0, %s265
      %s282 = sphi 0, %s266
    $region4: #{tpu_custom_call.1} parent=1 // loop_header_branch
      %27 = sbr.rel (%p25) target = $region8
    $region5: #{tpu_custom_call.1} parent=1 // loop_body
      %s29 = ssub.s32 %s24, 1
      %s30 = ssub.s32 %s24, 2
      %s37 = sadd.s32 1, %s32
      %p38 = scmp.ge.s32.totalorder %s37, 1
      %s39 = scalar_select %p38, 0, %s37
      %s40 = sadd.s32 1, %s31
      %s41 = scalar_select %p38, %s40, %s31
      %p42 = scmp.ge.s32.totalorder %s41, 2
      %s43 = scalar_select %p42, 0, %s41
      %s44 = sadd.s32 %s31, %s32
      %s45 = sadd.s32 %s43, %s39
      %s46 = ssub.s32 %s44, %s45
      %p47 = scmp.eq.s32.totalorder %s46, 0
      %s49 = sadd.s32 %s48, 1
      %s50 = scalar_select %p47, %s48, %s49
      %p53 = pneg %p47
      %p54 = scmp.eq.s32.totalorder %s24, 1
      %p55 = por %p53, %p54
      %p56 = scmp.ne.s32.totalorder %s48, %s51
      %p57 = scmp.eq.s32.totalorder %s24, 0
      %p58 = por %p56, %p57
      %p59 = scmp.ne.s32.totalorder %s48, %s51
      %p60 = scmp.eq.s32.totalorder %s29, 1
      %p61 = por %p59, %p60
      %p62 = scmp.ne.s32.totalorder %s51, %s52
      %p63 = scmp.eq.s32.totalorder %s29, 0
      %p64 = por %p62, %p63
      %p65 = scmp.ne.s32.totalorder %s51, %s52
      %p66 = scmp.eq.s32.totalorder %s30, 1
      %p67 = por %p65, %p66
      %p69 = scmp.ne.s32.totalorder %s52, %s68
      %p70 = scmp.eq.s32.totalorder %s30, 0
      %p71 = por %p69, %p70
      %s72 = sadd.s32 %s31, %s32
      %s73 = sadd.s32 %s43, %s39
      %s74 = ssub.s32 %s72, %s73
      %p75 = scmp.eq.s32.totalorder %s74, 0
      %s77 = sadd.s32 %s76, 1
      %s78 = scalar_select %p75, %s76, %s77
      %p81 = pneg %p75
      %p82 = scmp.eq.s32.totalorder %s24, 1
      %p83 = por %p81, %p82
      %p84 = scmp.ne.s32.totalorder %s76, %s79
      %p85 = scmp.eq.s32.totalorder %s24, 0
      %p86 = por %p84, %p85
      %p87 = scmp.ne.s32.totalorder %s76, %s79
      %p88 = scmp.eq.s32.totalorder %s29, 1
      %p89 = por %p87, %p88
      %p90 = scmp.ne.s32.totalorder %s79, %s80
      %p91 = scmp.eq.s32.totalorder %s29, 0
      %p92 = por %p90, %p91
      %p93 = scmp.ne.s32.totalorder %s79, %s80
      %p94 = scmp.eq.s32.totalorder %s30, 1
      %p95 = por %p93, %p94
      %p97 = scmp.ne.s32.totalorder %s80, %s96
      %p98 = scmp.eq.s32.totalorder %s30, 0
      %p99 = por %p97, %p98
      %s100 = sadd.s32 %s31, %s32
      %s101 = sadd.s32 %s43, %s39
      %s102 = ssub.s32 %s100, %s101
      %p103 = scmp.eq.s32.totalorder %s102, 0
      %s105 = sadd.s32 %s104, 1
      %s106 = scalar_select %p103, %s104, %s105
      %p109 = pneg %p103
      %p110 = scmp.eq.s32.totalorder %s24, 1
      %p111 = por %p109, %p110
      %p112 = scmp.ne.s32.totalorder %s104, %s107
      %p113 = scmp.eq.s32.totalorder %s24, 0
      %p114 = por %p112, %p113
      %p115 = scmp.ne.s32.totalorder %s104, %s107
      %p116 = scmp.eq.s32.totalorder %s29, 1
      %p117 = por %p115, %p116
      %p118 = scmp.ne.s32.totalorder %s107, %s108
      %p119 = scmp.eq.s32.totalorder %s29, 0
      %p120 = por %p118, %p119
      %p121 = scmp.ne.s32.totalorder %s107, %s108
      %p122 = scmp.eq.s32.totalorder %s30, 1
      %p123 = por %p121, %p122
      %p125 = scmp.ne.s32.totalorder %s108, %s124
      %p126 = scmp.eq.s32.totalorder %s30, 0
      %p127 = por %p125, %p126
      %s128 = sadd.s32 %s31, %s32
      %s129 = sadd.s32 %s43, %s39
      %s130 = ssub.s32 %s128, %s129
      %p131 = scmp.eq.s32.totalorder %s130, 0
      %s133 = sadd.s32 %s132, 1
      %s134 = scalar_select %p131, %s132, %s133
      %p137 = pneg %p131
      %p138 = scmp.eq.s32.totalorder %s24, 1
      %p139 = por %p137, %p138
      %p140 = scmp.ne.s32.totalorder %s132, %s135
      %p141 = scmp.eq.s32.totalorder %s24, 0
      %p142 = por %p140, %p141
      %p143 = scmp.ne.s32.totalorder %s132, %s135
      %p144 = scmp.eq.s32.totalorder %s29, 1
      %p145 = por %p143, %p144
      %p146 = scmp.ne.s32.totalorder %s135, %s136
      %p147 = scmp.eq.s32.totalorder %s29, 0
      %p148 = por %p146, %p147
      %p149 = scmp.ne.s32.totalorder %s135, %s136
      %p150 = scmp.eq.s32.totalorder %s30, 1
      %p151 = por %p149, %p150
      %p153 = scmp.ne.s32.totalorder %s136, %s152
      %p154 = scmp.eq.s32.totalorder %s30, 0
      %p155 = por %p153, %p154
      %s156 = ssub.s32 %s31, %s43
      %p157 = scmp.eq.s32.totalorder %s156, 0
      %s159 = sadd.s32 %s158, 1
      %s160 = scalar_select %p157, %s158, %s159
      %p163 = pneg %p157
      %p164 = scmp.eq.s32.totalorder %s24, 1
      %p165 = por %p163, %p164
      %p166 = scmp.ne.s32.totalorder %s158, %s161
      %p167 = scmp.eq.s32.totalorder %s24, 0
      %p168 = por %p166, %p167
      %p169 = scmp.ne.s32.totalorder %s158, %s161
      %p170 = scmp.eq.s32.totalorder %s29, 1
      %p171 = por %p169, %p170
      %p172 = scmp.ne.s32.totalorder %s161, %s162
      %p173 = scmp.eq.s32.totalorder %s29, 0
      %p174 = por %p172, %p173
      %p175 = scmp.ne.s32.totalorder %s161, %s162
      %p176 = scmp.eq.s32.totalorder %s30, 1
      %p177 = por %p175, %p176
      %p179 = scmp.ne.s32.totalorder %s162, %s178
      %p180 = scmp.eq.s32.totalorder %s30, 0
      %p181 = por %p179, %p180
      %s182 = ssub.s32 %s31, %s43
      %p183 = scmp.eq.s32.totalorder %s182, 0
      %s185 = sadd.s32 %s184, 1
      %s186 = scalar_select %p183, %s184, %s185
      %p189 = pneg %p183
      %p190 = scmp.eq.s32.totalorder %s24, 1
      %p191 = por %p189, %p190
      %p192 = scmp.ne.s32.totalorder %s184, %s187
      %p193 = scmp.eq.s32.totalorder %s24, 0
      %p194 = por %p192, %p193
      %p195 = scmp.ne.s32.totalorder %s184, %s187
      %p196 = scmp.eq.s32.totalorder %s29, 1
      %p197 = por %p195, %p196
      %p198 = scmp.ne.s32.totalorder %s187, %s188
      %p199 = scmp.eq.s32.totalorder %s29, 0
      %p200 = por %p198, %p199
      %p201 = scmp.ne.s32.totalorder %s187, %s188
      %p202 = scmp.eq.s32.totalorder %s30, 1
      %p203 = por %p201, %p202
      %p205 = scmp.ne.s32.totalorder %s188, %s204
      %p206 = scmp.eq.s32.totalorder %s30, 0
      %p207 = por %p205, %p206
      %s208 = ssub.s32 %s31, %s43
      %p209 = scmp.eq.s32.totalorder %s208, 0
      %s211 = sadd.s32 %s210, 1
      %s212 = scalar_select %p209, %s210, %s211
      %p215 = pneg %p209
      %p216 = scmp.eq.s32.totalorder %s24, 1
      %p217 = por %p215, %p216
      %p218 = scmp.ne.s32.totalorder %s210, %s213
      %p219 = scmp.eq.s32.totalorder %s24, 0
      %p220 = por %p218, %p219
      %p221 = scmp.ne.s32.totalorder %s210, %s213
      %p222 = scmp.eq.s32.totalorder %s29, 1
      %p223 = por %p221, %p222
      %p224 = scmp.ne.s32.totalorder %s213, %s214
      %p225 = scmp.eq.s32.totalorder %s29, 0
      %p226 = por %p224, %p225
      %p227 = scmp.ne.s32.totalorder %s213, %s214
      %p228 = scmp.eq.s32.totalorder %s30, 1
      %p229 = por %p227, %p228
      %p231 = scmp.ne.s32.totalorder %s214, %s230
      %p232 = scmp.eq.s32.totalorder %s30, 0
      %p233 = por %p231, %p232
      %s234 = ssub.s32 %s31, %s43
      %p235 = scmp.eq.s32.totalorder %s234, 0
      %s237 = sadd.s32 %s236, 1
      %s238 = scalar_select %p235, %s236, %s237
      %p241 = pneg %p235
      %p242 = scmp.eq.s32.totalorder %s24, 1
      %p243 = por %p241, %p242
      %p244 = scmp.ne.s32.totalorder %s236, %s239
      %p245 = scmp.eq.s32.totalorder %s24, 0
      %p246 = por %p244, %p245
      %p247 = scmp.ne.s32.totalorder %s236, %s239
      %p248 = scmp.eq.s32.totalorder %s29, 1
      %p249 = por %p247, %p248
      %p250 = scmp.ne.s32.totalorder %s239, %s240
      %p251 = scmp.eq.s32.totalorder %s29, 0
      %p252 = por %p250, %p251
      %p253 = scmp.ne.s32.totalorder %s239, %s240
      %p254 = scmp.eq.s32.totalorder %s30, 1
      %p255 = por %p253, %p254
      %p257 = scmp.ne.s32.totalorder %s240, %s256
      %p258 = scmp.eq.s32.totalorder %s30, 0
      %p259 = por %p257, %p258
      %s260 = ssub.s32 %s31, %s43
      %p261 = scmp.eq.s32.totalorder %s260, 0
      %s263 = sadd.s32 %s262, 1
      %s264 = scalar_select %p261, %s262, %s263
      %p267 = pneg %p261
      %p268 = scmp.eq.s32.totalorder %s24, 1
      %p269 = por %p267, %p268
      %p270 = scmp.ne.s32.totalorder %s262, %s265
      %p271 = scmp.eq.s32.totalorder %s24, 0
      %p272 = por %p270, %p271
      %p273 = scmp.ne.s32.totalorder %s262, %s265
      %p274 = scmp.eq.s32.totalorder %s29, 1
      %p275 = por %p273, %p274
      %p276 = scmp.ne.s32.totalorder %s265, %s266
      %p277 = scmp.eq.s32.totalorder %s29, 0
      %p278 = por %p276, %p277
      %p279 = scmp.ne.s32.totalorder %s265, %s266
      %p280 = scmp.eq.s32.totalorder %s30, 1
      %p281 = por %p279, %p280
      %p283 = scmp.ne.s32.totalorder %s266, %s282
      %p284 = scmp.eq.s32.totalorder %s30, 0
      %p285 = por %p283, %p284
      %p286 = scmp.le.s32.totalorder 1, %s24
      %p287 = scmp.lt.s32.totalorder %s24, 3
      %p288 = pnand %p286, %p287
      %p289 = pneg %p288
      // Predicated region
      $region9: #{tpu_custom_call.1} parent=5 // pred_check
        _
      $region10: #{tpu_custom_call.1} parent=5 // pred_check_branch
        %291 = sbr.rel (%p288) target = $region12
      $region11: #{tpu_custom_call.1} parent=5 // pred_region
        %s292 = ssub.s32 %s24, 1
      $region12: #{tpu_custom_call.1} parent=5 // pred_fallthru
        _
      %p293 = scmp.lt.s32.totalorder %s24, 2
      // Predicated region
      $region13: #{tpu_custom_call.1} parent=5 // pred_check
        %p294 = pneg %p293
      $region14: #{tpu_custom_call.1} parent=5 // pred_check_branch
        %296 = sbr.rel (%p294) target = $region16
      $region15: #{tpu_custom_call.1} parent=5 // pred_region
        // Predicated region
        $region17: #{tpu_custom_call.1} parent=15 // pred_check
          %p297 = pneg %p58
        $region18: #{tpu_custom_call.1} parent=15 // pred_check_branch
          %299 = sbr.rel (%p297) target = $region20
        $region19: #{tpu_custom_call.1} parent=15 // pred_region
          %s300 = sand.u32 %s48, 1
          %s301 = scalar_lea.sflag [#allocation8], %s300
          %s302 = sand.u32 %s48, 1
          %s303 = smul.addr %s302, 128
          %s304 = scalar_lea.vmem [#allocation7], %s303
          %s305 = sadd.s32 %s31, %s32
          %s306 = smul.u32 4, %s305
          %s308 = ssub.s32 2048, 2048
          %309 = vsyncadd %s301, %s308
          %s310 = smul.addr %s306, 4
          %s311 = smul.addr %s310, 128
          %s312 = scalar_lea.hbm %s0, %s311
          %s313 = sshll.u32 %s304, 4
          %s314 = int_to_ptr.vmem [resolvable:$true] %s313
          %319 = dma.hbm_to_vmem [thread:$0]  %s312, 2048, %s314, %s301, 512, 512, 32
        $region20: #{tpu_custom_call.1} parent=15 // pred_fallthru
          _
        // Predicated region
        $region21: #{tpu_custom_call.1} parent=15 // pred_check
          %p320 = pneg %p86
        $region22: #{tpu_custom_call.1} parent=15 // pred_check_branch
          %322 = sbr.rel (%p320) target = $region24
        $region23: #{tpu_custom_call.1} parent=15 // pred_region
          %s323 = sand.u32 %s24, 1
          %s324 = scalar_lea.sflag [#allocation10], %s323
          %s325 = sand.u32 %s76, 1
          %s326 = smul.addr %s325, 128
          %s327 = scalar_lea.vmem [#allocation9], %s326
          %s328 = sadd.s32 %s31, %s32
          %s329 = smul.u32 4, %s328
          %s331 = ssub.s32 2048, 2048
          %332 = vsyncadd %s324, %s331
          %s333 = smul.addr %s329, 4
          %s334 = smul.addr %s333, 128
          %s335 = scalar_lea.hbm %s1, %s334
          %s336 = sshll.u32 %s327, 4
          %s337 = int_to_ptr.vmem [resolvable:$true] %s336
          %342 = dma.hbm_to_vmem [thread:$0]  %s335, 2048, %s337, %s324, 512, 512, 32
        $region24: #{tpu_custom_call.1} parent=15 // pred_fallthru
          _
        // Predicated region
        $region25: #{tpu_custom_call.1} parent=15 // pred_check
          %p343 = pneg %p114
        $region26: #{tpu_custom_call.1} parent=15 // pred_check_branch
          %345 = sbr.rel (%p343) target = $region28
        $region27: #{tpu_custom_call.1} parent=15 // pred_region
          %s346 = sand.u32 %s24, 1
          %s347 = scalar_lea.sflag [#allocation10], %s346
          %s348 = sand.u32 %s104, 1
          %s349 = smul.addr %s348, 128
          %s350 = scalar_lea.vmem [#allocation11], %s349
          %s351 = sadd.s32 %s31, %s32
          %s352 = smul.u32 4, %s351
          %s354 = ssub.s32 2048, 2048
          %355 = vsyncadd %s347, %s354
          %s356 = smul.addr %s352, 4
          %s357 = smul.addr %s356, 128
          %s358 = scalar_lea.hbm %s2, %s357
          %s359 = sshll.u32 %s350, 4
          %s360 = int_to_ptr.vmem [resolvable:$true] %s359
          %365 = dma.hbm_to_vmem [thread:$0]  %s358, 2048, %s360, %s347, 512, 512, 32
        $region28: #{tpu_custom_call.1} parent=15 // pred_fallthru
          _
        // Predicated region
        $region29: #{tpu_custom_call.1} parent=15 // pred_check
          %p366 = pneg %p142
        $region30: #{tpu_custom_call.1} parent=15 // pred_check_branch
          %368 = sbr.rel (%p366) target = $region32
        $region31: #{tpu_custom_call.1} parent=15 // pred_region
          %s369 = sand.u32 %s132, 1
          %s370 = scalar_lea.sflag [#allocation13], %s369
          %s371 = sand.u32 %s132, 1
          %s372 = smul.addr %s371, 128
          %s373 = scalar_lea.vmem [#allocation12], %s372
          %s374 = sadd.s32 %s31, %s32
          %s375 = smul.u32 4, %s374
          %s377 = ssub.s32 2048, 2048
          %378 = vsyncadd %s370, %s377
          %s379 = smul.addr %s375, 4
          %s380 = smul.addr %s379, 128
          %s381 = scalar_lea.hbm %s3, %s380
          %s382 = sshll.u32 %s373, 4
          %s383 = int_to_ptr.vmem [resolvable:$true] %s382
          %388 = dma.hbm_to_vmem [thread:$0]  %s381, 2048, %s383, %s370, 512, 512, 32
        $region32: #{tpu_custom_call.1} parent=15 // pred_fallthru
          _
      $region16: #{tpu_custom_call.1} parent=5 // pred_fallthru
        _
      %p389 = scmp.le.s32.totalorder 1, %s24
      %p390 = scmp.lt.s32.totalorder %s24, 3
      %p391 = pnand %p389, %p390
      %p392 = pneg %p391
      // Predicated region
      $region33: #{tpu_custom_call.1} parent=5 // pred_check
        _
      $region34: #{tpu_custom_call.1} parent=5 // pred_check_branch
        %394 = sbr.rel (%p391) target = $region36
      $region35: #{tpu_custom_call.1} parent=5 // pred_region
        %s395 = ssub.s32 %s24, 1
        %s396 = sand.u32 %s51, 1
        %s397 = scalar_lea.sflag [#allocation8], %s396
        %s398 = sand.u32 %s51, 1
        %s399 = smul.addr %s398, 128
        %s400 = scalar_lea.vmem [#allocation7], %s399
        // Predicated region
        $region37: #{tpu_custom_call.1} parent=35 // pred_check
          %p401 = pneg %p64
        $region38: #{tpu_custom_call.1} parent=35 // pred_check_branch
          %403 = sbr.rel (%p401) target = $region40
        $region39: #{tpu_custom_call.1} parent=35 // pred_region
          %404 = dma.done %s397, 2048
        $region40: #{tpu_custom_call.1} parent=35 // pred_fallthru
          _
        %s405 = sand.u32 %s29, 1
        %s406 = scalar_lea.sflag [#allocation10], %s405
        %s407 = sand.u32 %s79, 1
        %s408 = smul.addr %s407, 128
        %s409 = scalar_lea.vmem [#allocation9], %s408
        // Predicated region
        $region41: #{tpu_custom_call.1} parent=35 // pred_check
          %p410 = pneg %p92
        $region42: #{tpu_custom_call.1} parent=35 // pred_check_branch
          %412 = sbr.rel (%p410) target = $region44
        $region43: #{tpu_custom_call.1} parent=35 // pred_region
          %413 = dma.done %s406, 2048
        $region44: #{tpu_custom_call.1} parent=35 // pred_fallthru
          _
        %s414 = sand.u32 %s29, 1
        %s415 = scalar_lea.sflag [#allocation10], %s414
        %s416 = sand.u32 %s107, 1
        %s417 = smul.addr %s416, 128
        %s418 = scalar_lea.vmem [#allocation11], %s417
        // Predicated region
        $region45: #{tpu_custom_call.1} parent=35 // pred_check
          %p419 = pneg %p120
        $region46: #{tpu_custom_call.1} parent=35 // pred_check_branch
          %421 = sbr.rel (%p419) target = $region48
        $region47: #{tpu_custom_call.1} parent=35 // pred_region
          %422 = dma.done %s415, 2048
        $region48: #{tpu_custom_call.1} parent=35 // pred_fallthru
          _
        %s423 = sand.u32 %s135, 1
        %s424 = scalar_lea.sflag [#allocation13], %s423
        %s425 = sand.u32 %s135, 1
        %s426 = smul.addr %s425, 128
        %s427 = scalar_lea.vmem [#allocation12], %s426
        // Predicated region
        $region49: #{tpu_custom_call.1} parent=35 // pred_check
          %p428 = pneg %p148
        $region50: #{tpu_custom_call.1} parent=35 // pred_check_branch
          %430 = sbr.rel (%p428) target = $region52
        $region51: #{tpu_custom_call.1} parent=35 // pred_region
          %431 = dma.done %s424, 2048
        $region52: #{tpu_custom_call.1} parent=35 // pred_fallthru
          _
        %s432 = sand.u32 %s51, 1
        %s433 = scalar_lea.sflag [#allocation8], %s432
        %s434 = sand.u32 %s51, 1
        %s435 = smul.addr %s434, 128
        %s436 = scalar_lea.vmem [#allocation7], %s435
        %p437 = pneg %p64
        %p438 = pneg %p61
        %s439 = sand.u32 %s29, 1
        %s440 = scalar_lea.sflag [#allocation10], %s439
        %s441 = sand.u32 %s79, 1
        %s442 = smul.addr %s441, 128
        %s443 = scalar_lea.vmem [#allocation9], %s442
        %p444 = pneg %p92
        %p445 = pneg %p89
        %s446 = sand.u32 %s29, 1
        %s447 = scalar_lea.sflag [#allocation10], %s446
        %s448 = sand.u32 %s107, 1
        %s449 = smul.addr %s448, 128
        %s450 = scalar_lea.vmem [#allocation11], %s449
        %p451 = pneg %p120
        %p452 = pneg %p117
        %s453 = sand.u32 %s135, 1
        %s454 = scalar_lea.sflag [#allocation13], %s453
        %s455 = sand.u32 %s135, 1
        %s456 = smul.addr %s455, 128
        %s457 = scalar_lea.vmem [#allocation12], %s456
        %p458 = pneg %p148
        %p459 = pneg %p145
        %p460 = pneg %p174
        %p461 = pneg %p171
        %p462 = scmp.lt.s32.totalorder %s33, 1
        %s463 = scalar_select %p462, %s33, 1
        %s464 = scalar_lea.vmem %s4, %s463
        %p465 = pneg %p200
        %p466 = pneg %p197
        %p467 = scmp.lt.s32.totalorder %s33, 1
        %s468 = scalar_select %p467, %s33, 1
        %s469 = scalar_lea.vmem %s5, %s468
        %p470 = pneg %p226
        %p471 = pneg %p223
        %p472 = scmp.lt.s32.totalorder %s33, 1
        %s473 = scalar_select %p472, %s33, 1
        %s474 = scalar_lea.vmem %s6, %s473
        %p475 = pneg %p252
        %p476 = pneg %p249
        %p477 = scmp.lt.s32.totalorder %s33, 1
        %s478 = scalar_select %p477, %s33, 1
        %s479 = scalar_lea.vmem %s7, %s478
        %p480 = pneg %p278
        %p481 = pneg %p275
        %p482 = scmp.lt.s32.totalorder %s33, 1
        %s483 = scalar_select %p482, %s33, 1
        %s484 = scalar_lea.vmem %s8, %s483
        %s485 = sadd.s32 %s33, %s34
        %s486 = smul.u32 4, %s485
        %s487 = sadd.s32 %s33, %s34
        %s488 = smul.u32 4, %s487
        %s489 = sadd.s32 %s33, %s34
        %s490 = smul.u32 4, %s489
        %s491 = sadd.s32 %s33, %s34
        %s492 = smul.u32 4, %s491
        %p493 = scmp.lt.s32.totalorder %s33, 1
        %s494 = scalar_select %p493, %s33, 1
        %s495 = scalar_lea.vmem %s4, %s494
        %p496 = scmp.lt.s32.totalorder %s33, 1
        %s497 = scalar_select %p496, %s33, 1
        %s498 = scalar_lea.vmem %s5, %s497
        %p499 = scmp.lt.s32.totalorder %s33, 1
        %s500 = scalar_select %p499, %s33, 1
        %s501 = scalar_lea.vmem %s6, %s500
        %p502 = scmp.lt.s32.totalorder %s33, 1
        %s503 = scalar_select %p502, %s33, 1
        %s504 = scalar_lea.vmem %s7, %s503
        %p505 = scmp.lt.s32.totalorder %s33, 1
        %s506 = scalar_select %p505, %s33, 1
        %s507 = scalar_lea.vmem %s8, %s506
        %p508 = scmp.eq.s32.totalorder %s34, 0
        // Predicated region
        $region53: #{tpu_custom_call.1} parent=35 // pred_check
          %p509 = pneg %p508
        $region54: #{tpu_custom_call.1} parent=35 // pred_check_branch
          %511 = sbr.rel (%p509) target = $region56
        $region55: #{tpu_custom_call.1} parent=35 // pred_region
          %512 = vst [vmem:[#allocation2] sm:$0xff] 0.0
          %513 = vst [vmem:[#allocation2 + $0x8] sm:$0xff] 0.0
          %514 = vst [vmem:[#allocation2 + $0x10] sm:$0xff] 0.0
          %515 = vst [vmem:[#allocation2 + $0x18] sm:$0xff] 0.0
          %516 = vst [vmem:[#allocation2 + $0x20] sm:$0xff] 0.0
          %517 = vst [vmem:[#allocation2 + $0x28] sm:$0xff] 0.0
          %518 = vst [vmem:[#allocation2 + $0x30] sm:$0xff] 0.0
          %519 = vst [vmem:[#allocation2 + $0x38] sm:$0xff] 0.0
          %520 = vst [vmem:[#allocation2 + $0x40] sm:$0xff] 0.0
          %521 = vst [vmem:[#allocation2 + $0x48] sm:$0xff] 0.0
          %522 = vst [vmem:[#allocation2 + $0x50] sm:$0xff] 0.0
          %523 = vst [vmem:[#allocation2 + $0x58] sm:$0xff] 0.0
          %524 = vst [vmem:[#allocation2 + $0x60] sm:$0xff] 0.0
          %525 = vst [vmem:[#allocation2 + $0x68] sm:$0xff] 0.0
          %526 = vst [vmem:[#allocation2 + $0x70] sm:$0xff] 0.0
          %527 = vst [vmem:[#allocation2 + $0x78] sm:$0xff] 0.0
          %528 = vst [vmem:[#allocation3] sm:$0xff] 0.0
          %529 = vst [vmem:[#allocation3 + $0x8] sm:$0xff] 0.0
          %530 = vst [vmem:[#allocation3 + $0x10] sm:$0xff] 0.0
          %531 = vst [vmem:[#allocation3 + $0x18] sm:$0xff] 0.0
          %532 = vst [vmem:[#allocation3 + $0x20] sm:$0xff] 0.0
          %533 = vst [vmem:[#allocation3 + $0x28] sm:$0xff] 0.0
          %534 = vst [vmem:[#allocation3 + $0x30] sm:$0xff] 0.0
          %535 = vst [vmem:[#allocation3 + $0x38] sm:$0xff] 0.0
          %536 = vst [vmem:[#allocation3 + $0x40] sm:$0xff] 0.0
          %537 = vst [vmem:[#allocation3 + $0x48] sm:$0xff] 0.0
          %538 = vst [vmem:[#allocation3 + $0x50] sm:$0xff] 0.0
          %539 = vst [vmem:[#allocation3 + $0x58] sm:$0xff] 0.0
          %540 = vst [vmem:[#allocation3 + $0x60] sm:$0xff] 0.0
          %541 = vst [vmem:[#allocation3 + $0x68] sm:$0xff] 0.0
          %542 = vst [vmem:[#allocation3 + $0x70] sm:$0xff] 0.0
          %543 = vst [vmem:[#allocation3 + $0x78] sm:$0xff] 0.0
          %544 = vst [vmem:[#allocation4] sm:$0xff] 0.0
          %545 = vst [vmem:[#allocation4 + $0x8] sm:$0xff] 0.0
          %546 = vst [vmem:[#allocation4 + $0x10] sm:$0xff] 0.0
          %547 = vst [vmem:[#allocation4 + $0x18] sm:$0xff] 0.0
          %548 = vst [vmem:[#allocation4 + $0x20] sm:$0xff] 0.0
          %549 = vst [vmem:[#allocation4 + $0x28] sm:$0xff] 0.0
          %550 = vst [vmem:[#allocation4 + $0x30] sm:$0xff] 0.0
          %551 = vst [vmem:[#allocation4 + $0x38] sm:$0xff] 0.0
          %552 = vst [vmem:[#allocation4 + $0x40] sm:$0xff] 0.0
          %553 = vst [vmem:[#allocation4 + $0x48] sm:$0xff] 0.0
          %554 = vst [vmem:[#allocation4 + $0x50] sm:$0xff] 0.0
          %555 = vst [vmem:[#allocation4 + $0x58] sm:$0xff] 0.0
          %556 = vst [vmem:[#allocation4 + $0x60] sm:$0xff] 0.0
          %557 = vst [vmem:[#allocation4 + $0x68] sm:$0xff] 0.0
          %558 = vst [vmem:[#allocation4 + $0x70] sm:$0xff] 0.0
          %559 = vst [vmem:[#allocation4 + $0x78] sm:$0xff] 0.0
          %560 = vst [vmem:[#allocation5] sm:$0xff] 0.0
          %561 = vst [vmem:[#allocation5 + $0x8] sm:$0xff] 0.0
          %562 = vst [vmem:[#allocation5 + $0x10] sm:$0xff] 0.0
          %563 = vst [vmem:[#allocation5 + $0x18] sm:$0xff] 0.0
          %564 = vst [vmem:[#allocation5 + $0x20] sm:$0xff] 0.0
          %565 = vst [vmem:[#allocation5 + $0x28] sm:$0xff] 0.0
          %566 = vst [vmem:[#allocation5 + $0x30] sm:$0xff] 0.0
          %567 = vst [vmem:[#allocation5 + $0x38] sm:$0xff] 0.0
          %568 = vst [vmem:[#allocation5 + $0x40] sm:$0xff] 0.0
          %569 = vst [vmem:[#allocation5 + $0x48] sm:$0xff] 0.0
          %570 = vst [vmem:[#allocation5 + $0x50] sm:$0xff] 0.0
          %571 = vst [vmem:[#allocation5 + $0x58] sm:$0xff] 0.0
          %572 = vst [vmem:[#allocation5 + $0x60] sm:$0xff] 0.0
          %573 = vst [vmem:[#allocation5 + $0x68] sm:$0xff] 0.0
          %574 = vst [vmem:[#allocation5 + $0x70] sm:$0xff] 0.0
          %575 = vst [vmem:[#allocation5 + $0x78] sm:$0xff] 0.0
          %576 = vst [vmem:[#allocation6] sm:$0xff] 0.0
          %577 = vst [vmem:[#allocation6 + $0x8] sm:$0xff] 0.0
          %578 = vst [vmem:[#allocation6 + $0x10] sm:$0xff] 0.0
          %579 = vst [vmem:[#allocation6 + $0x18] sm:$0xff] 0.0
          %580 = vst [vmem:[#allocation6 + $0x20] sm:$0xff] 0.0
          %581 = vst [vmem:[#allocation6 + $0x28] sm:$0xff] 0.0
          %582 = vst [vmem:[#allocation6 + $0x30] sm:$0xff] 0.0
          %583 = vst [vmem:[#allocation6 + $0x38] sm:$0xff] 0.0
          %584 = vst [vmem:[#allocation6 + $0x40] sm:$0xff] 0.0
          %585 = vst [vmem:[#allocation6 + $0x48] sm:$0xff] 0.0
          %586 = vst [vmem:[#allocation6 + $0x50] sm:$0xff] 0.0
          %587 = vst [vmem:[#allocation6 + $0x58] sm:$0xff] 0.0
          %588 = vst [vmem:[#allocation6 + $0x60] sm:$0xff] 0.0
          %589 = vst [vmem:[#allocation6 + $0x68] sm:$0xff] 0.0
          %590 = vst [vmem:[#allocation6 + $0x70] sm:$0xff] 0.0
          %591 = vst [vmem:[#allocation6 + $0x78] sm:$0xff] 0.0
        $region56: #{tpu_custom_call.1} parent=35 // pred_fallthru
          _
        %v592 = vld [vmem:[%s400] sm:$0xff]
        %v593 = vld [vmem:[%s400 + $0x8] sm:$0xff]
        %v594 = vld [vmem:[%s400 + $0x10] sm:$0xff]
        %v595 = vld [vmem:[%s400 + $0x18] sm:$0xff]
        %v596 = vld [vmem:[%s400 + $0x20] sm:$0xff]
        %v597 = vld [vmem:[%s400 + $0x28] sm:$0xff]
        %v598 = vld [vmem:[%s400 + $0x30] sm:$0xff]
        %v599 = vld [vmem:[%s400 + $0x38] sm:$0xff]
        %v600 = vld [vmem:[%s400 + $0x40] sm:$0xff]
        %v601 = vld [vmem:[%s400 + $0x48] sm:$0xff]
        %v602 = vld [vmem:[%s400 + $0x50] sm:$0xff]
        %v603 = vld [vmem:[%s400 + $0x58] sm:$0xff]
        %v604 = vld [vmem:[%s400 + $0x60] sm:$0xff]
        %v605 = vld [vmem:[%s400 + $0x68] sm:$0xff]
        %v606 = vld [vmem:[%s400 + $0x70] sm:$0xff]
        %v607 = vld [vmem:[%s400 + $0x78] sm:$0xff]
        %v608 = vld [vmem:[%s409] sm:$0xff]
        %v609 = vld [vmem:[%s409 + $0x8] sm:$0xff]
        %v610 = vld [vmem:[%s409 + $0x10] sm:$0xff]
        %v611 = vld [vmem:[%s409 + $0x18] sm:$0xff]
        %v612 = vld [vmem:[%s409 + $0x20] sm:$0xff]
        %v613 = vld [vmem:[%s409 + $0x28] sm:$0xff]
        %v614 = vld [vmem:[%s409 + $0x30] sm:$0xff]
        %v615 = vld [vmem:[%s409 + $0x38] sm:$0xff]
        %v616 = vld [vmem:[%s409 + $0x40] sm:$0xff]
        %v617 = vld [vmem:[%s409 + $0x48] sm:$0xff]
        %v618 = vld [vmem:[%s409 + $0x50] sm:$0xff]
        %v619 = vld [vmem:[%s409 + $0x58] sm:$0xff]
        %v620 = vld [vmem:[%s409 + $0x60] sm:$0xff]
        %v621 = vld [vmem:[%s409 + $0x68] sm:$0xff]
        %v622 = vld [vmem:[%s409 + $0x70] sm:$0xff]
        %v623 = vld [vmem:[%s409 + $0x78] sm:$0xff]
        %v624 = vld [vmem:[%s418] sm:$0xff]
        %v625 = vld [vmem:[%s418 + $0x8] sm:$0xff]
        %v626 = vld [vmem:[%s418 + $0x10] sm:$0xff]
        %v627 = vld [vmem:[%s418 + $0x18] sm:$0xff]
        %v628 = vld [vmem:[%s418 + $0x20] sm:$0xff]
        %v629 = vld [vmem:[%s418 + $0x28] sm:$0xff]
        %v630 = vld [vmem:[%s418 + $0x30] sm:$0xff]
        %v631 = vld [vmem:[%s418 + $0x38] sm:$0xff]
        %v632 = vld [vmem:[%s418 + $0x40] sm:$0xff]
        %v633 = vld [vmem:[%s418 + $0x48] sm:$0xff]
        %v634 = vld [vmem:[%s418 + $0x50] sm:$0xff]
        %v635 = vld [vmem:[%s418 + $0x58] sm:$0xff]
        %v636 = vld [vmem:[%s418 + $0x60] sm:$0xff]
        %v637 = vld [vmem:[%s418 + $0x68] sm:$0xff]
        %v638 = vld [vmem:[%s418 + $0x70] sm:$0xff]
        %v639 = vld [vmem:[%s418 + $0x78] sm:$0xff]
        %v640 = vld [vmem:[%s427] sm:$0xff]
        %v641 = vld [vmem:[%s427 + $0x8] sm:$0xff]
        %v642 = vld [vmem:[%s427 + $0x10] sm:$0xff]
        %v643 = vld [vmem:[%s427 + $0x18] sm:$0xff]
        %v644 = vld [vmem:[%s427 + $0x20] sm:$0xff]
        %v645 = vld [vmem:[%s427 + $0x28] sm:$0xff]
        %v646 = vld [vmem:[%s427 + $0x30] sm:$0xff]
        %v647 = vld [vmem:[%s427 + $0x38] sm:$0xff]
        %v648 = vld [vmem:[%s427 + $0x40] sm:$0xff]
        %v649 = vld [vmem:[%s427 + $0x48] sm:$0xff]
        %v650 = vld [vmem:[%s427 + $0x50] sm:$0xff]
        %v651 = vld [vmem:[%s427 + $0x58] sm:$0xff]
        %v652 = vld [vmem:[%s427 + $0x60] sm:$0xff]
        %v653 = vld [vmem:[%s427 + $0x68] sm:$0xff]
        %v654 = vld [vmem:[%s427 + $0x70] sm:$0xff]
        %v655 = vld [vmem:[%s427 + $0x78] sm:$0xff]
        %v656 = vmul.f32 %v592, %v640
        %v657 = vmul.f32 %v593, %v641
        %v658 = vmul.f32 %v594, %v642
        %v659 = vmul.f32 %v595, %v643
        %v660 = vmul.f32 %v596, %v644
        %v661 = vmul.f32 %v597, %v645
        %v662 = vmul.f32 %v598, %v646
        %v663 = vmul.f32 %v599, %v647
        %v664 = vmul.f32 %v600, %v648
        %v665 = vmul.f32 %v601, %v649
        %v666 = vmul.f32 %v602, %v650
        %v667 = vmul.f32 %v603, %v651
        %v668 = vmul.f32 %v604, %v652
        %v669 = vmul.f32 %v605, %v653
        %v670 = vmul.f32 %v606, %v654
        %v671 = vmul.f32 %v607, %v655
        %v672 = vmul.f32 %v608, %v640
        %v673 = vmul.f32 %v609, %v641
        %v674 = vmul.f32 %v610, %v642
        %v675 = vmul.f32 %v611, %v643
        %v676 = vmul.f32 %v612, %v644
        %v677 = vmul.f32 %v613, %v645
        %v678 = vmul.f32 %v614, %v646
        %v679 = vmul.f32 %v615, %v647
        %v680 = vmul.f32 %v616, %v648
        %v681 = vmul.f32 %v617, %v649
        %v682 = vmul.f32 %v618, %v650
        %v683 = vmul.f32 %v619, %v651
        %v684 = vmul.f32 %v620, %v652
        %v685 = vmul.f32 %v621, %v653
        %v686 = vmul.f32 %v622, %v654
        %v687 = vmul.f32 %v623, %v655
        %v688 = vmul.f32 %v624, %v640
        %v689 = vmul.f32 %v625, %v641
        %v690 = vmul.f32 %v626, %v642
        %v691 = vmul.f32 %v627, %v643
        %v692 = vmul.f32 %v628, %v644
        %v693 = vmul.f32 %v629, %v645
        %v694 = vmul.f32 %v630, %v646
        %v695 = vmul.f32 %v631, %v647
        %v696 = vmul.f32 %v632, %v648
        %v697 = vmul.f32 %v633, %v649
        %v698 = vmul.f32 %v634, %v650
        %v699 = vmul.f32 %v635, %v651
        %v700 = vmul.f32 %v636, %v652
        %v701 = vmul.f32 %v637, %v653
        %v702 = vmul.f32 %v638, %v654
        %v703 = vmul.f32 %v639, %v655
        %v704 = vld [vmem:[#allocation2] sm:$0xff]
        %v705 = vld [vmem:[#allocation2 + $0x8] sm:$0xff]
        %v706 = vld [vmem:[#allocation2 + $0x10] sm:$0xff]
        %v707 = vld [vmem:[#allocation2 + $0x18] sm:$0xff]
        %v708 = vld [vmem:[#allocation2 + $0x20] sm:$0xff]
        %v709 = vld [vmem:[#allocation2 + $0x28] sm:$0xff]
        %v710 = vld [vmem:[#allocation2 + $0x30] sm:$0xff]
        %v711 = vld [vmem:[#allocation2 + $0x38] sm:$0xff]
        %v712 = vld [vmem:[#allocation2 + $0x40] sm:$0xff]
        %v713 = vld [vmem:[#allocation2 + $0x48] sm:$0xff]
        %v714 = vld [vmem:[#allocation2 + $0x50] sm:$0xff]
        %v715 = vld [vmem:[#allocation2 + $0x58] sm:$0xff]
        %v716 = vld [vmem:[#allocation2 + $0x60] sm:$0xff]
        %v717 = vld [vmem:[#allocation2 + $0x68] sm:$0xff]
        %v718 = vld [vmem:[#allocation2 + $0x70] sm:$0xff]
        %v719 = vld [vmem:[#allocation2 + $0x78] sm:$0xff]
        %v720 = vmul.f32 %v656, %v624
        %v721 = vmul.f32 %v657, %v625
        %v722 = vmul.f32 %v658, %v626
        %v723 = vmul.f32 %v659, %v627
        %v724 = vmul.f32 %v660, %v628
        %v725 = vmul.f32 %v661, %v629
        %v726 = vmul.f32 %v662, %v630
        %v727 = vmul.f32 %v663, %v631
        %v728 = vmul.f32 %v664, %v632
        %v729 = vmul.f32 %v665, %v633
        %v730 = vmul.f32 %v666, %v634
        %v731 = vmul.f32 %v667, %v635
        %v732 = vmul.f32 %v668, %v636
        %v733 = vmul.f32 %v669, %v637
        %v734 = vmul.f32 %v670, %v638
        %v735 = vmul.f32 %v671, %v639
        %v736 = vadd.f32 %v704, %v720
        %v737 = vadd.f32 %v705, %v721
        %v738 = vadd.f32 %v706, %v722
        %v739 = vadd.f32 %v707, %v723
        %v740 = vadd.f32 %v708, %v724
        %v741 = vadd.f32 %v709, %v725
        %v742 = vadd.f32 %v710, %v726
        %v743 = vadd.f32 %v711, %v727
        %v744 = vadd.f32 %v712, %v728
        %v745 = vadd.f32 %v713, %v729
        %v746 = vadd.f32 %v714, %v730
        %v747 = vadd.f32 %v715, %v731
        %v748 = vadd.f32 %v716, %v732
        %v749 = vadd.f32 %v717, %v733
        %v750 = vadd.f32 %v718, %v734
        %v751 = vadd.f32 %v719, %v735
        %752 = vst [vmem:[#allocation2] sm:$0xff] %v736
        %753 = vst [vmem:[#allocation2 + $0x8] sm:$0xff] %v737
        %754 = vst [vmem:[#allocation2 + $0x10] sm:$0xff] %v738
        %755 = vst [vmem:[#allocation2 + $0x18] sm:$0xff] %v739
        %756 = vst [vmem:[#allocation2 + $0x20] sm:$0xff] %v740
        %757 = vst [vmem:[#allocation2 + $0x28] sm:$0xff] %v741
        %758 = vst [vmem:[#allocation2 + $0x30] sm:$0xff] %v742
        %759 = vst [vmem:[#allocation2 + $0x38] sm:$0xff] %v743
        %760 = vst [vmem:[#allocation2 + $0x40] sm:$0xff] %v744
        %761 = vst [vmem:[#allocation2 + $0x48] sm:$0xff] %v745
        %762 = vst [vmem:[#allocation2 + $0x50] sm:$0xff] %v746
        %763 = vst [vmem:[#allocation2 + $0x58] sm:$0xff] %v747
        %764 = vst [vmem:[#allocation2 + $0x60] sm:$0xff] %v748
        %765 = vst [vmem:[#allocation2 + $0x68] sm:$0xff] %v749
        %766 = vst [vmem:[#allocation2 + $0x70] sm:$0xff] %v750
        %767 = vst [vmem:[#allocation2 + $0x78] sm:$0xff] %v751
        %v768 = vld [vmem:[#allocation3] sm:$0xff]
        %v769 = vld [vmem:[#allocation3 + $0x8] sm:$0xff]
        %v770 = vld [vmem:[#allocation3 + $0x10] sm:$0xff]
        %v771 = vld [vmem:[#allocation3 + $0x18] sm:$0xff]
        %v772 = vld [vmem:[#allocation3 + $0x20] sm:$0xff]
        %v773 = vld [vmem:[#allocation3 + $0x28] sm:$0xff]
        %v774 = vld [vmem:[#allocation3 + $0x30] sm:$0xff]
        %v775 = vld [vmem:[#allocation3 + $0x38] sm:$0xff]
        %v776 = vld [vmem:[#allocation3 + $0x40] sm:$0xff]
        %v777 = vld [vmem:[#allocation3 + $0x48] sm:$0xff]
        %v778 = vld [vmem:[#allocation3 + $0x50] sm:$0xff]
        %v779 = vld [vmem:[#allocation3 + $0x58] sm:$0xff]
        %v780 = vld [vmem:[#allocation3 + $0x60] sm:$0xff]
        %v781 = vld [vmem:[#allocation3 + $0x68] sm:$0xff]
        %v782 = vld [vmem:[#allocation3 + $0x70] sm:$0xff]
        %v783 = vld [vmem:[#allocation3 + $0x78] sm:$0xff]
        %v784 = vadd.f32 %v768, %v656
        %v785 = vadd.f32 %v769, %v657
        %v786 = vadd.f32 %v770, %v658
        %v787 = vadd.f32 %v771, %v659
        %v788 = vadd.f32 %v772, %v660
        %v789 = vadd.f32 %v773, %v661
        %v790 = vadd.f32 %v774, %v662
        %v791 = vadd.f32 %v775, %v663
        %v792 = vadd.f32 %v776, %v664
        %v793 = vadd.f32 %v777, %v665
        %v794 = vadd.f32 %v778, %v666
        %v795 = vadd.f32 %v779, %v667
        %v796 = vadd.f32 %v780, %v668
        %v797 = vadd.f32 %v781, %v669
        %v798 = vadd.f32 %v782, %v670
        %v799 = vadd.f32 %v783, %v671
        %800 = vst [vmem:[#allocation3] sm:$0xff] %v784
        %801 = vst [vmem:[#allocation3 + $0x8] sm:$0xff] %v785
        %802 = vst [vmem:[#allocation3 + $0x10] sm:$0xff] %v786
        %803 = vst [vmem:[#allocation3 + $0x18] sm:$0xff] %v787
        %804 = vst [vmem:[#allocation3 + $0x20] sm:$0xff] %v788
        %805 = vst [vmem:[#allocation3 + $0x28] sm:$0xff] %v789
        %806 = vst [vmem:[#allocation3 + $0x30] sm:$0xff] %v790
        %807 = vst [vmem:[#allocation3 + $0x38] sm:$0xff] %v791
        %808 = vst [vmem:[#allocation3 + $0x40] sm:$0xff] %v792
        %809 = vst [vmem:[#allocation3 + $0x48] sm:$0xff] %v793
        %810 = vst [vmem:[#allocation3 + $0x50] sm:$0xff] %v794
        %811 = vst [vmem:[#allocation3 + $0x58] sm:$0xff] %v795
        %812 = vst [vmem:[#allocation3 + $0x60] sm:$0xff] %v796
        %813 = vst [vmem:[#allocation3 + $0x68] sm:$0xff] %v797
        %814 = vst [vmem:[#allocation3 + $0x70] sm:$0xff] %v798
        %815 = vst [vmem:[#allocation3 + $0x78] sm:$0xff] %v799
        %v816 = vld [vmem:[#allocation4] sm:$0xff]
        %v817 = vld [vmem:[#allocation4 + $0x8] sm:$0xff]
        %v818 = vld [vmem:[#allocation4 + $0x10] sm:$0xff]
        %v819 = vld [vmem:[#allocation4 + $0x18] sm:$0xff]
        %v820 = vld [vmem:[#allocation4 + $0x20] sm:$0xff]
        %v821 = vld [vmem:[#allocation4 + $0x28] sm:$0xff]
        %v822 = vld [vmem:[#allocation4 + $0x30] sm:$0xff]
        %v823 = vld [vmem:[#allocation4 + $0x38] sm:$0xff]
        %v824 = vld [vmem:[#allocation4 + $0x40] sm:$0xff]
        %v825 = vld [vmem:[#allocation4 + $0x48] sm:$0xff]
        %v826 = vld [vmem:[#allocation4 + $0x50] sm:$0xff]
        %v827 = vld [vmem:[#allocation4 + $0x58] sm:$0xff]
        %v828 = vld [vmem:[#allocation4 + $0x60] sm:$0xff]
        %v829 = vld [vmem:[#allocation4 + $0x68] sm:$0xff]
        %v830 = vld [vmem:[#allocation4 + $0x70] sm:$0xff]
        %v831 = vld [vmem:[#allocation4 + $0x78] sm:$0xff]
        %v832 = vmul.f32 %v672, %v624
        %v833 = vmul.f32 %v673, %v625
        %v834 = vmul.f32 %v674, %v626
        %v835 = vmul.f32 %v675, %v627
        %v836 = vmul.f32 %v676, %v628
        %v837 = vmul.f32 %v677, %v629
        %v838 = vmul.f32 %v678, %v630
        %v839 = vmul.f32 %v679, %v631
        %v840 = vmul.f32 %v680, %v632
        %v841 = vmul.f32 %v681, %v633
        %v842 = vmul.f32 %v682, %v634
        %v843 = vmul.f32 %v683, %v635
        %v844 = vmul.f32 %v684, %v636
        %v845 = vmul.f32 %v685, %v637
        %v846 = vmul.f32 %v686, %v638
        %v847 = vmul.f32 %v687, %v639
        %v848 = vadd.f32 %v816, %v832
        %v849 = vadd.f32 %v817, %v833
        %v850 = vadd.f32 %v818, %v834
        %v851 = vadd.f32 %v819, %v835
        %v852 = vadd.f32 %v820, %v836
        %v853 = vadd.f32 %v821, %v837
        %v854 = vadd.f32 %v822, %v838
        %v855 = vadd.f32 %v823, %v839
        %v856 = vadd.f32 %v824, %v840
        %v857 = vadd.f32 %v825, %v841
        %v858 = vadd.f32 %v826, %v842
        %v859 = vadd.f32 %v827, %v843
        %v860 = vadd.f32 %v828, %v844
        %v861 = vadd.f32 %v829, %v845
        %v862 = vadd.f32 %v830, %v846
        %v863 = vadd.f32 %v831, %v847
        %864 = vst [vmem:[#allocation4] sm:$0xff] %v848
        %865 = vst [vmem:[#allocation4 + $0x8] sm:$0xff] %v849
        %866 = vst [vmem:[#allocation4 + $0x10] sm:$0xff] %v850
        %867 = vst [vmem:[#allocation4 + $0x18] sm:$0xff] %v851
        %868 = vst [vmem:[#allocation4 + $0x20] sm:$0xff] %v852
        %869 = vst [vmem:[#allocation4 + $0x28] sm:$0xff] %v853
        %870 = vst [vmem:[#allocation4 + $0x30] sm:$0xff] %v854
        %871 = vst [vmem:[#allocation4 + $0x38] sm:$0xff] %v855
        %872 = vst [vmem:[#allocation4 + $0x40] sm:$0xff] %v856
        %873 = vst [vmem:[#allocation4 + $0x48] sm:$0xff] %v857
        %874 = vst [vmem:[#allocation4 + $0x50] sm:$0xff] %v858
        %875 = vst [vmem:[#allocation4 + $0x58] sm:$0xff] %v859
        %876 = vst [vmem:[#allocation4 + $0x60] sm:$0xff] %v860
        %877 = vst [vmem:[#allocation4 + $0x68] sm:$0xff] %v861
        %878 = vst [vmem:[#allocation4 + $0x70] sm:$0xff] %v862
        %879 = vst [vmem:[#allocation4 + $0x78] sm:$0xff] %v863
        %v880 = vld [vmem:[#allocation5] sm:$0xff]
        %v881 = vld [vmem:[#allocation5 + $0x8] sm:$0xff]
        %v882 = vld [vmem:[#allocation5 + $0x10] sm:$0xff]
        %v883 = vld [vmem:[#allocation5 + $0x18] sm:$0xff]
        %v884 = vld [vmem:[#allocation5 + $0x20] sm:$0xff]
        %v885 = vld [vmem:[#allocation5 + $0x28] sm:$0xff]
        %v886 = vld [vmem:[#allocation5 + $0x30] sm:$0xff]
        %v887 = vld [vmem:[#allocation5 + $0x38] sm:$0xff]
        %v888 = vld [vmem:[#allocation5 + $0x40] sm:$0xff]
        %v889 = vld [vmem:[#allocation5 + $0x48] sm:$0xff]
        %v890 = vld [vmem:[#allocation5 + $0x50] sm:$0xff]
        %v891 = vld [vmem:[#allocation5 + $0x58] sm:$0xff]
        %v892 = vld [vmem:[#allocation5 + $0x60] sm:$0xff]
        %v893 = vld [vmem:[#allocation5 + $0x68] sm:$0xff]
        %v894 = vld [vmem:[#allocation5 + $0x70] sm:$0xff]
        %v895 = vld [vmem:[#allocation5 + $0x78] sm:$0xff]
        %v896 = vadd.f32 %v880, %v672
        %v897 = vadd.f32 %v881, %v673
        %v898 = vadd.f32 %v882, %v674
        %v899 = vadd.f32 %v883, %v675
        %v900 = vadd.f32 %v884, %v676
        %v901 = vadd.f32 %v885, %v677
        %v902 = vadd.f32 %v886, %v678
        %v903 = vadd.f32 %v887, %v679
        %v904 = vadd.f32 %v888, %v680
        %v905 = vadd.f32 %v889, %v681
        %v906 = vadd.f32 %v890, %v682
        %v907 = vadd.f32 %v891, %v683
        %v908 = vadd.f32 %v892, %v684
        %v909 = vadd.f32 %v893, %v685
        %v910 = vadd.f32 %v894, %v686
        %v911 = vadd.f32 %v895, %v687
        %912 = vst [vmem:[#allocation5] sm:$0xff] %v896
        %913 = vst [vmem:[#allocation5 + $0x8] sm:$0xff] %v897
        %914 = vst [vmem:[#allocation5 + $0x10] sm:$0xff] %v898
        %915 = vst [vmem:[#allocation5 + $0x18] sm:$0xff] %v899
        %916 = vst [vmem:[#allocation5 + $0x20] sm:$0xff] %v900
        %917 = vst [vmem:[#allocation5 + $0x28] sm:$0xff] %v901
        %918 = vst [vmem:[#allocation5 + $0x30] sm:$0xff] %v902
        %919 = vst [vmem:[#allocation5 + $0x38] sm:$0xff] %v903
        %920 = vst [vmem:[#allocation5 + $0x40] sm:$0xff] %v904
        %921 = vst [vmem:[#allocation5 + $0x48] sm:$0xff] %v905
        %922 = vst [vmem:[#allocation5 + $0x50] sm:$0xff] %v906
        %923 = vst [vmem:[#allocation5 + $0x58] sm:$0xff] %v907
        %924 = vst [vmem:[#allocation5 + $0x60] sm:$0xff] %v908
        %925 = vst [vmem:[#allocation5 + $0x68] sm:$0xff] %v909
        %926 = vst [vmem:[#allocation5 + $0x70] sm:$0xff] %v910
        %927 = vst [vmem:[#allocation5 + $0x78] sm:$0xff] %v911
        %v928 = vld [vmem:[#allocation6] sm:$0xff]
        %v929 = vld [vmem:[#allocation6 + $0x8] sm:$0xff]
        %v930 = vld [vmem:[#allocation6 + $0x10] sm:$0xff]
        %v931 = vld [vmem:[#allocation6 + $0x18] sm:$0xff]
        %v932 = vld [vmem:[#allocation6 + $0x20] sm:$0xff]
        %v933 = vld [vmem:[#allocation6 + $0x28] sm:$0xff]
        %v934 = vld [vmem:[#allocation6 + $0x30] sm:$0xff]
        %v935 = vld [vmem:[#allocation6 + $0x38] sm:$0xff]
        %v936 = vld [vmem:[#allocation6 + $0x40] sm:$0xff]
        %v937 = vld [vmem:[#allocation6 + $0x48] sm:$0xff]
        %v938 = vld [vmem:[#allocation6 + $0x50] sm:$0xff]
        %v939 = vld [vmem:[#allocation6 + $0x58] sm:$0xff]
        %v940 = vld [vmem:[#allocation6 + $0x60] sm:$0xff]
        %v941 = vld [vmem:[#allocation6 + $0x68] sm:$0xff]
        %v942 = vld [vmem:[#allocation6 + $0x70] sm:$0xff]
        %v943 = vld [vmem:[#allocation6 + $0x78] sm:$0xff]
        %v944 = vadd.f32 %v928, %v688
        %v945 = vadd.f32 %v929, %v689
        %v946 = vadd.f32 %v930, %v690
        %v947 = vadd.f32 %v931, %v691
        %v948 = vadd.f32 %v932, %v692
        %v949 = vadd.f32 %v933, %v693
        %v950 = vadd.f32 %v934, %v694
        %v951 = vadd.f32 %v935, %v695
        %v952 = vadd.f32 %v936, %v696
        %v953 = vadd.f32 %v937, %v697
        %v954 = vadd.f32 %v938, %v698
        %v955 = vadd.f32 %v939, %v699
        %v956 = vadd.f32 %v940, %v700
        %v957 = vadd.f32 %v941, %v701
        %v958 = vadd.f32 %v942, %v702
        %v959 = vadd.f32 %v943, %v703
        %960 = vst [vmem:[#allocation6] sm:$0xff] %v944
        %961 = vst [vmem:[#allocation6 + $0x8] sm:$0xff] %v945
        %962 = vst [vmem:[#allocation6 + $0x10] sm:$0xff] %v946
        %963 = vst [vmem:[#allocation6 + $0x18] sm:$0xff] %v947
        %964 = vst [vmem:[#allocation6 + $0x20] sm:$0xff] %v948
        %965 = vst [vmem:[#allocation6 + $0x28] sm:$0xff] %v949
        %966 = vst [vmem:[#allocation6 + $0x30] sm:$0xff] %v950
        %967 = vst [vmem:[#allocation6 + $0x38] sm:$0xff] %v951
        %968 = vst [vmem:[#allocation6 + $0x40] sm:$0xff] %v952
        %969 = vst [vmem:[#allocation6 + $0x48] sm:$0xff] %v953
        %970 = vst [vmem:[#allocation6 + $0x50] sm:$0xff] %v954
        %971 = vst [vmem:[#allocation6 + $0x58] sm:$0xff] %v955
        %972 = vst [vmem:[#allocation6 + $0x60] sm:$0xff] %v956
        %973 = vst [vmem:[#allocation6 + $0x68] sm:$0xff] %v957
        %974 = vst [vmem:[#allocation6 + $0x70] sm:$0xff] %v958
        %975 = vst [vmem:[#allocation6 + $0x78] sm:$0xff] %v959
        // Predicated region
        $region57: #{tpu_custom_call.1} parent=35 // pred_check
          %p976 = pneg %p508
        $region58: #{tpu_custom_call.1} parent=35 // pred_check_branch
          %978 = sbr.rel (%p976) target = $region60
        $region59: #{tpu_custom_call.1} parent=35 // pred_region
          %v979 = vld [vmem:[#allocation2] sm:$0xff]
          %v980 = vld [vmem:[#allocation2 + $0x8] sm:$0xff]
          %v981 = vld [vmem:[#allocation2 + $0x10] sm:$0xff]
          %v982 = vld [vmem:[#allocation2 + $0x18] sm:$0xff]
          %v983 = vld [vmem:[#allocation2 + $0x20] sm:$0xff]
          %v984 = vld [vmem:[#allocation2 + $0x28] sm:$0xff]
          %v985 = vld [vmem:[#allocation2 + $0x30] sm:$0xff]
          %v986 = vld [vmem:[#allocation2 + $0x38] sm:$0xff]
          %v987 = vld [vmem:[#allocation2 + $0x40] sm:$0xff]
          %v988 = vld [vmem:[#allocation2 + $0x48] sm:$0xff]
          %v989 = vld [vmem:[#allocation2 + $0x50] sm:$0xff]
          %v990 = vld [vmem:[#allocation2 + $0x58] sm:$0xff]
          %v991 = vld [vmem:[#allocation2 + $0x60] sm:$0xff]
          %v992 = vld [vmem:[#allocation2 + $0x68] sm:$0xff]
          %v993 = vld [vmem:[#allocation2 + $0x70] sm:$0xff]
          %v994 = vld [vmem:[#allocation2 + $0x78] sm:$0xff]
          %v995 = vadd.f32 %v979, %v980
          %v996 = vadd.f32 %v995, %v981
          %v997 = vadd.f32 %v996, %v982
          %v998 = vadd.f32 %v997, %v983
          %v999 = vadd.f32 %v998, %v984
          %v1000 = vadd.f32 %v999, %v985
          %v1001 = vadd.f32 %v1000, %v986
          %v1002 = vadd.f32 %v1001, %v987
          %v1003 = vadd.f32 %v1002, %v988
          %v1004 = vadd.f32 %v1003, %v989
          %v1005 = vadd.f32 %v1004, %v990
          %v1006 = vadd.f32 %v1005, %v991
          %v1007 = vadd.f32 %v1006, %v992
          %v1008 = vadd.f32 %v1007, %v993
          %v1009 = vadd.f32 %v1008, %v994
          %1010 = vadd.xlane.f32.xlu0 %v1009
          %v1011 = vpop.xlane.xlu0 %1010
          %v1012 = vrot.slane %v1011, 4
          %v1013 = vadd.f32 %v1011, %v1012
          %v1014 = vrot.slane %v1013, 2
          %v1015 = vadd.f32 %v1013, %v1014
          %v1016 = vrot.slane %v1015, 1
          %v1017 = vadd.f32 %v1015, %v1016
          %s1018 = vtos %v1017
          %v1019 = vstv %s1018
          %vm1020 = vcmask 0
          %1021 = vst.msk [vmem:[%s495] sm:$0x1] %vm1020, %v1019
          %v1022 = vld [vmem:[#allocation3] sm:$0xff]
          %v1023 = vld [vmem:[#allocation3 + $0x8] sm:$0xff]
          %v1024 = vld [vmem:[#allocation3 + $0x10] sm:$0xff]
          %v1025 = vld [vmem:[#allocation3 + $0x18] sm:$0xff]
          %v1026 = vld [vmem:[#allocation3 + $0x20] sm:$0xff]
          %v1027 = vld [vmem:[#allocation3 + $0x28] sm:$0xff]
          %v1028 = vld [vmem:[#allocation3 + $0x30] sm:$0xff]
          %v1029 = vld [vmem:[#allocation3 + $0x38] sm:$0xff]
          %v1030 = vld [vmem:[#allocation3 + $0x40] sm:$0xff]
          %v1031 = vld [vmem:[#allocation3 + $0x48] sm:$0xff]
          %v1032 = vld [vmem:[#allocation3 + $0x50] sm:$0xff]
          %v1033 = vld [vmem:[#allocation3 + $0x58] sm:$0xff]
          %v1034 = vld [vmem:[#allocation3 + $0x60] sm:$0xff]
          %v1035 = vld [vmem:[#allocation3 + $0x68] sm:$0xff]
          %v1036 = vld [vmem:[#allocation3 + $0x70] sm:$0xff]
          %v1037 = vld [vmem:[#allocation3 + $0x78] sm:$0xff]
          %v1038 = vadd.f32 %v1022, %v1023
          %v1039 = vadd.f32 %v1038, %v1024
          %v1040 = vadd.f32 %v1039, %v1025
          %v1041 = vadd.f32 %v1040, %v1026
          %v1042 = vadd.f32 %v1041, %v1027
          %v1043 = vadd.f32 %v1042, %v1028
          %v1044 = vadd.f32 %v1043, %v1029
          %v1045 = vadd.f32 %v1044, %v1030
          %v1046 = vadd.f32 %v1045, %v1031
          %v1047 = vadd.f32 %v1046, %v1032
          %v1048 = vadd.f32 %v1047, %v1033
          %v1049 = vadd.f32 %v1048, %v1034
          %v1050 = vadd.f32 %v1049, %v1035
          %v1051 = vadd.f32 %v1050, %v1036
          %v1052 = vadd.f32 %v1051, %v1037
          %1053 = vadd.xlane.f32.xlu0 %v1052
          %v1054 = vpop.xlane.xlu0 %1053
          %v1055 = vrot.slane %v1054, 4
          %v1056 = vadd.f32 %v1054, %v1055
          %v1057 = vrot.slane %v1056, 2
          %v1058 = vadd.f32 %v1056, %v1057
          %v1059 = vrot.slane %v1058, 1
          %v1060 = vadd.f32 %v1058, %v1059
          %s1061 = vtos %v1060
          %v1062 = vstv %s1061
          %1063 = vst.msk [vmem:[%s498] sm:$0x1] %vm1020, %v1062
          %v1064 = vld [vmem:[#allocation4] sm:$0xff]
          %v1065 = vld [vmem:[#allocation4 + $0x8] sm:$0xff]
          %v1066 = vld [vmem:[#allocation4 + $0x10] sm:$0xff]
          %v1067 = vld [vmem:[#allocation4 + $0x18] sm:$0xff]
          %v1068 = vld [vmem:[#allocation4 + $0x20] sm:$0xff]
          %v1069 = vld [vmem:[#allocation4 + $0x28] sm:$0xff]
          %v1070 = vld [vmem:[#allocation4 + $0x30] sm:$0xff]
          %v1071 = vld [vmem:[#allocation4 + $0x38] sm:$0xff]
          %v1072 = vld [vmem:[#allocation4 + $0x40] sm:$0xff]
          %v1073 = vld [vmem:[#allocation4 + $0x48] sm:$0xff]
          %v1074 = vld [vmem:[#allocation4 + $0x50] sm:$0xff]
          %v1075 = vld [vmem:[#allocation4 + $0x58] sm:$0xff]
          %v1076 = vld [vmem:[#allocation4 + $0x60] sm:$0xff]
          %v1077 = vld [vmem:[#allocation4 + $0x68] sm:$0xff]
          %v1078 = vld [vmem:[#allocation4 + $0x70] sm:$0xff]
          %v1079 = vld [vmem:[#allocation4 + $0x78] sm:$0xff]
          %v1080 = vadd.f32 %v1064, %v1065
          %v1081 = vadd.f32 %v1080, %v1066
          %v1082 = vadd.f32 %v1081, %v1067
          %v1083 = vadd.f32 %v1082, %v1068
          %v1084 = vadd.f32 %v1083, %v1069
          %v1085 = vadd.f32 %v1084, %v1070
          %v1086 = vadd.f32 %v1085, %v1071
          %v1087 = vadd.f32 %v1086, %v1072
          %v1088 = vadd.f32 %v1087, %v1073
          %v1089 = vadd.f32 %v1088, %v1074
          %v1090 = vadd.f32 %v1089, %v1075
          %v1091 = vadd.f32 %v1090, %v1076
          %v1092 = vadd.f32 %v1091, %v1077
          %v1093 = vadd.f32 %v1092, %v1078
          %v1094 = vadd.f32 %v1093, %v1079
          %1095 = vadd.xlane.f32.xlu0 %v1094
          %v1096 = vpop.xlane.xlu0 %1095
          %v1097 = vrot.slane %v1096, 4
          %v1098 = vadd.f32 %v1096, %v1097
          %v1099 = vrot.slane %v1098, 2
          %v1100 = vadd.f32 %v1098, %v1099
          %v1101 = vrot.slane %v1100, 1
          %v1102 = vadd.f32 %v1100, %v1101
          %s1103 = vtos %v1102
          %v1104 = vstv %s1103
          %1105 = vst.msk [vmem:[%s501] sm:$0x1] %vm1020, %v1104
          %v1106 = vld [vmem:[#allocation5] sm:$0xff]
          %v1107 = vld [vmem:[#allocation5 + $0x8] sm:$0xff]
          %v1108 = vld [vmem:[#allocation5 + $0x10] sm:$0xff]
          %v1109 = vld [vmem:[#allocation5 + $0x18] sm:$0xff]
          %v1110 = vld [vmem:[#allocation5 + $0x20] sm:$0xff]
          %v1111 = vld [vmem:[#allocation5 + $0x28] sm:$0xff]
          %v1112 = vld [vmem:[#allocation5 + $0x30] sm:$0xff]
          %v1113 = vld [vmem:[#allocation5 + $0x38] sm:$0xff]
          %v1114 = vld [vmem:[#allocation5 + $0x40] sm:$0xff]
          %v1115 = vld [vmem:[#allocation5 + $0x48] sm:$0xff]
          %v1116 = vld [vmem:[#allocation5 + $0x50] sm:$0xff]
          %v1117 = vld [vmem:[#allocation5 + $0x58] sm:$0xff]
          %v1118 = vld [vmem:[#allocation5 + $0x60] sm:$0xff]
          %v1119 = vld [vmem:[#allocation5 + $0x68] sm:$0xff]
          %v1120 = vld [vmem:[#allocation5 + $0x70] sm:$0xff]
          %v1121 = vld [vmem:[#allocation5 + $0x78] sm:$0xff]
          %v1122 = vadd.f32 %v1106, %v1107
          %v1123 = vadd.f32 %v1122, %v1108
          %v1124 = vadd.f32 %v1123, %v1109
          %v1125 = vadd.f32 %v1124, %v1110
          %v1126 = vadd.f32 %v1125, %v1111
          %v1127 = vadd.f32 %v1126, %v1112
          %v1128 = vadd.f32 %v1127, %v1113
          %v1129 = vadd.f32 %v1128, %v1114
          %v1130 = vadd.f32 %v1129, %v1115
          %v1131 = vadd.f32 %v1130, %v1116
          %v1132 = vadd.f32 %v1131, %v1117
          %v1133 = vadd.f32 %v1132, %v1118
          %v1134 = vadd.f32 %v1133, %v1119
          %v1135 = vadd.f32 %v1134, %v1120
          %v1136 = vadd.f32 %v1135, %v1121
          %1137 = vadd.xlane.f32.xlu0 %v1136
          %v1138 = vpop.xlane.xlu0 %1137
          %v1139 = vrot.slane %v1138, 4
          %v1140 = vadd.f32 %v1138, %v1139
          %v1141 = vrot.slane %v1140, 2
          %v1142 = vadd.f32 %v1140, %v1141
          %v1143 = vrot.slane %v1142, 1
          %v1144 = vadd.f32 %v1142, %v1143
          %s1145 = vtos %v1144
          %v1146 = vstv %s1145
          %1147 = vst.msk [vmem:[%s504] sm:$0x1] %vm1020, %v1146
          %v1148 = vld [vmem:[#allocation6] sm:$0xff]
          %v1149 = vld [vmem:[#allocation6 + $0x8] sm:$0xff]
          %v1150 = vld [vmem:[#allocation6 + $0x10] sm:$0xff]
          %v1151 = vld [vmem:[#allocation6 + $0x18] sm:$0xff]
          %v1152 = vld [vmem:[#allocation6 + $0x20] sm:$0xff]
          %v1153 = vld [vmem:[#allocation6 + $0x28] sm:$0xff]
          %v1154 = vld [vmem:[#allocation6 + $0x30] sm:$0xff]
          %v1155 = vld [vmem:[#allocation6 + $0x38] sm:$0xff]
          %v1156 = vld [vmem:[#allocation6 + $0x40] sm:$0xff]
          %v1157 = vld [vmem:[#allocation6 + $0x48] sm:$0xff]
          %v1158 = vld [vmem:[#allocation6 + $0x50] sm:$0xff]
          %v1159 = vld [vmem:[#allocation6 + $0x58] sm:$0xff]
          %v1160 = vld [vmem:[#allocation6 + $0x60] sm:$0xff]
          %v1161 = vld [vmem:[#allocation6 + $0x68] sm:$0xff]
          %v1162 = vld [vmem:[#allocation6 + $0x70] sm:$0xff]
          %v1163 = vld [vmem:[#allocation6 + $0x78] sm:$0xff]
          %v1164 = vadd.f32 %v1148, %v1149
          %v1165 = vadd.f32 %v1164, %v1150
          %v1166 = vadd.f32 %v1165, %v1151
          %v1167 = vadd.f32 %v1166, %v1152
          %v1168 = vadd.f32 %v1167, %v1153
          %v1169 = vadd.f32 %v1168, %v1154
          %v1170 = vadd.f32 %v1169, %v1155
          %v1171 = vadd.f32 %v1170, %v1156
          %v1172 = vadd.f32 %v1171, %v1157
          %v1173 = vadd.f32 %v1172, %v1158
          %v1174 = vadd.f32 %v1173, %v1159
          %v1175 = vadd.f32 %v1174, %v1160
          %v1176 = vadd.f32 %v1175, %v1161
          %v1177 = vadd.f32 %v1176, %v1162
          %v1178 = vadd.f32 %v1177, %v1163
          %1179 = vadd.xlane.f32.xlu0 %v1178
          %v1180 = vpop.xlane.xlu0 %1179
          %v1181 = vrot.slane %v1180, 4
          %v1182 = vadd.f32 %v1180, %v1181
          %v1183 = vrot.slane %v1182, 2
          %v1184 = vadd.f32 %v1182, %v1183
          %v1185 = vrot.slane %v1184, 1
          %v1186 = vadd.f32 %v1184, %v1185
          %s1187 = vtos %v1186
          %v1188 = vstv %s1187
          %1189 = vst.msk [vmem:[%s507] sm:$0x1] %vm1020, %v1188
        $region60: #{tpu_custom_call.1} parent=35 // pred_fallthru
          _
        %p1190 = scmp.lt.s32.totalorder %s33, 1
        %s1191 = scalar_select %p1190, %s33, 1
        %s1192 = scalar_lea.vmem %s4, %s1191
        %p1193 = scmp.lt.s32.totalorder %s33, 1
        %s1194 = scalar_select %p1193, %s33, 1
        %s1195 = scalar_lea.vmem %s5, %s1194
        %p1196 = scmp.lt.s32.totalorder %s33, 1
        %s1197 = scalar_select %p1196, %s33, 1
        %s1198 = scalar_lea.vmem %s6, %s1197
        %p1199 = scmp.lt.s32.totalorder %s33, 1
        %s1200 = scalar_select %p1199, %s33, 1
        %s1201 = scalar_lea.vmem %s7, %s1200
        %p1202 = scmp.lt.s32.totalorder %s33, 1
        %s1203 = scalar_select %p1202, %s33, 1
        %s1204 = scalar_lea.vmem %s8, %s1203
        // Predicated region
        $region61: #{tpu_custom_call.1} parent=35 // pred_check
          %p1205 = pneg %p171
        $region62: #{tpu_custom_call.1} parent=35 // pred_check_branch
          %1207 = sbr.rel (%p1205) target = $region64
        $region63: #{tpu_custom_call.1} parent=35 // pred_region
          _
        $region64: #{tpu_custom_call.1} parent=35 // pred_fallthru
          _
        // Predicated region
        $region65: #{tpu_custom_call.1} parent=35 // pred_check
          %p1208 = pneg %p197
        $region66: #{tpu_custom_call.1} parent=35 // pred_check_branch
          %1210 = sbr.rel (%p1208) target = $region68
        $region67: #{tpu_custom_call.1} parent=35 // pred_region
          _
        $region68: #{tpu_custom_call.1} parent=35 // pred_fallthru
          _
        // Predicated region
        $region69: #{tpu_custom_call.1} parent=35 // pred_check
          %p1211 = pneg %p223
        $region70: #{tpu_custom_call.1} parent=35 // pred_check_branch
          %1213 = sbr.rel (%p1211) target = $region72
        $region71: #{tpu_custom_call.1} parent=35 // pred_region
          _
        $region72: #{tpu_custom_call.1} parent=35 // pred_fallthru
          _
        // Predicated region
        $region73: #{tpu_custom_call.1} parent=35 // pred_check
          %p1214 = pneg %p249
        $region74: #{tpu_custom_call.1} parent=35 // pred_check_branch
          %1216 = sbr.rel (%p1214) target = $region76
        $region75: #{tpu_custom_call.1} parent=35 // pred_region
          _
        $region76: #{tpu_custom_call.1} parent=35 // pred_fallthru
          _
        // Predicated region
        $region77: #{tpu_custom_call.1} parent=35 // pred_check
          %p1217 = pneg %p275
        $region78: #{tpu_custom_call.1} parent=35 // pred_check_branch
          %1219 = sbr.rel (%p1217) target = $region80
        $region79: #{tpu_custom_call.1} parent=35 // pred_region
          _
        $region80: #{tpu_custom_call.1} parent=35 // pred_fallthru
          _
      $region36: #{tpu_custom_call.1} parent=5 // pred_fallthru
        _
      %p1220 = scmp.le.s32.totalorder 2, %s24
      // Predicated region
      $region81: #{tpu_custom_call.1} parent=5 // pred_check
        %p1221 = pneg %p1220
      $region82: #{tpu_custom_call.1} parent=5 // pred_check_branch
        %1223 = sbr.rel (%p1221) target = $region84
      $region83: #{tpu_custom_call.1} parent=5 // pred_region
        %s1224 = ssub.s32 %s24, 2
        // Predicated region
        $region85: #{tpu_custom_call.1} parent=83 // pred_check
          %p1225 = pneg %p177
        $region86: #{tpu_custom_call.1} parent=83 // pred_check_branch
          %1227 = sbr.rel (%p1225) target = $region88
        $region87: #{tpu_custom_call.1} parent=83 // pred_region
          %p1228 = scmp.lt.s32.totalorder %s35, 1
          %s1229 = scalar_select %p1228, %s35, 1
          %s1230 = scalar_lea.vmem %s4, %s1229
        $region88: #{tpu_custom_call.1} parent=83 // pred_fallthru
          _
        // Predicated region
        $region89: #{tpu_custom_call.1} parent=83 // pred_check
          %p1231 = pneg %p203
        $region90: #{tpu_custom_call.1} parent=83 // pred_check_branch
          %1233 = sbr.rel (%p1231) target = $region92
        $region91: #{tpu_custom_call.1} parent=83 // pred_region
          %p1234 = scmp.lt.s32.totalorder %s35, 1
          %s1235 = scalar_select %p1234, %s35, 1
          %s1236 = scalar_lea.vmem %s5, %s1235
        $region92: #{tpu_custom_call.1} parent=83 // pred_fallthru
          _
        // Predicated region
        $region93: #{tpu_custom_call.1} parent=83 // pred_check
          %p1237 = pneg %p229
        $region94: #{tpu_custom_call.1} parent=83 // pred_check_branch
          %1239 = sbr.rel (%p1237) target = $region96
        $region95: #{tpu_custom_call.1} parent=83 // pred_region
          %p1240 = scmp.lt.s32.totalorder %s35, 1
          %s1241 = scalar_select %p1240, %s35, 1
          %s1242 = scalar_lea.vmem %s6, %s1241
        $region96: #{tpu_custom_call.1} parent=83 // pred_fallthru
          _
        // Predicated region
        $region97: #{tpu_custom_call.1} parent=83 // pred_check
          %p1243 = pneg %p255
        $region98: #{tpu_custom_call.1} parent=83 // pred_check_branch
          %1245 = sbr.rel (%p1243) target = $region100
        $region99: #{tpu_custom_call.1} parent=83 // pred_region
          %p1246 = scmp.lt.s32.totalorder %s35, 1
          %s1247 = scalar_select %p1246, %s35, 1
          %s1248 = scalar_lea.vmem %s7, %s1247
        $region100: #{tpu_custom_call.1} parent=83 // pred_fallthru
          _
        // Predicated region
        $region101: #{tpu_custom_call.1} parent=83 // pred_check
          %p1249 = pneg %p281
        $region102: #{tpu_custom_call.1} parent=83 // pred_check_branch
          %1251 = sbr.rel (%p1249) target = $region104
        $region103: #{tpu_custom_call.1} parent=83 // pred_region
          %p1252 = scmp.lt.s32.totalorder %s35, 1
          %s1253 = scalar_select %p1252, %s35, 1
          %s1254 = scalar_lea.vmem %s8, %s1253
        $region104: #{tpu_custom_call.1} parent=83 // pred_fallthru
          _
      $region84: #{tpu_custom_call.1} parent=5 // pred_fallthru
        _
    $region6: #{tpu_custom_call.1} parent=1 // loop_footer
      %s28 = sadd.s32 1, %s24
    $region7: #{tpu_custom_call.1} parent=1 // loop_footer_branch
      %23 = sbr.rel target = $region3
    $region8: #{tpu_custom_call.1} parent=1 // loop_exit
      _
    %1255 = vsyncpa [#allocation8], 1
    %s1256 = scalar_lea.sflag [#allocation8], 1
    %1257 = vsyncpa %s1256, 1
    %1258 = vsyncpa [#allocation10], 1
    %s1259 = scalar_lea.sflag [#allocation10], 1
    %1260 = vsyncpa %s1259, 1
    %1261 = vsyncpa [#allocation13], 1
    %s1262 = scalar_lea.sflag [#allocation13], 1
    %1263 = vsyncpa %s1262, 1

</llo_original>
